<compile_context>
chip_gen: v7x
topology: tpu7x:2x2x1
jax: 0.10.0
libtpu: 0.0.40
codegen_flags: <defaults>
</compile_context>

<pallas_src>
import functools

import numpy as np
import jax
import jax.numpy as jnp
from jax.experimental import pallas as pl
from jax.experimental.pallas import tpu as pltpu


def _round_up(v, m):
    return ((v + m - 1) // m) * m


# ----------------------------------------------------------------------------
# Fused forward kernel: 4 batched matmuls + 3 maxima + 1 lane-dense store
# ----------------------------------------------------------------------------
def _lenet1d_kernel(x_ref, w1_ref, b1_ref, w2_ref, b2_ref,
                    wf1_ref, bf1_ref, wf2_ref, bf2_ref, out_ref, *, p1, p2):
    f32 = jnp.float32
    bf16 = jnp.bfloat16

    x = x_ref[...]                                              # (TB, L) f32

    # conv1 (+ bias) for both pool1 phases at once; halves are 128-aligned.
    h1 = jnp.dot(x, w1_ref[...], preferred_element_type=f32) + b1_ref[...]
    h1p = jnp.maximum(h1[:, :p1], h1[:, p1:])                   # pool1 -> (TB, P1)

    # conv2 (+ bias) for both pool2 phases at once (bf16 MXU, f32 accumulate).
    h2 = jnp.dot(h1p.astype(bf16), w2_ref[...],
                 preferred_element_type=f32) + b2_ref[...]
    h2p = jnp.maximum(h2[:, :p2], h2[:, p2:])                   # pool2 -> (TB, P2)

    # fc1 + ReLU (NCW flatten already folded into wf1 rows).
    z = jnp.dot(h2p.astype(bf16), wf1_ref[...],
                preferred_element_type=f32) + bf1_ref[...]
    z = jnp.maximum(z, 0.0)

    # fc2, logits zero-padded to 128 lanes -> one unmasked lane-dense store.
    o = jnp.dot(z.astype(bf16), wf2_ref[...],
                preferred_element_type=f32) + bf2_ref[...]
    out_ref[...] = o.astype(out_ref.dtype)


# ----------------------------------------------------------------------------
# Parameters: PyTorch-layout init + one-time packing into kernel layouts
# ----------------------------------------------------------------------------
def init_params(key, len_input, conv1=(16, 3, 1), pool1=(2, 2),
                conv2=(32, 4, 2), pool2=(2, 2), fc1=256, num_classes=3):
    """PyTorch-layout parameters with U(-1/sqrt(fan_in), +1/sqrt(fan_in)) init."""
    n = len_input
    n = (n - conv1[1]) // conv1[2] + 1
    n = (n - pool1[0]) // pool1[1] + 1
    n = (n - conv2[1]) // conv2[2] + 1
    n = (n - pool2[0]) // pool2[1] + 1
    flat = n * conv2[0]

    ks = jax.random.split(key, 8)

    def u(k, shape, fan_in):
        bound = 1.0 / float(fan_in) ** 0.5
        return jax.random.uniform(k, shape, jnp.float32, -bound, bound)

    return {
        "conv1_w": u(ks[0], (conv1[0], 1, conv1[1]), 1 * conv1[1]),
        "conv1_b": u(ks[1], (conv1[0],), 1 * conv1[1]),
        "conv2_w": u(ks[2], (conv2[0], conv1[0], conv2[1]), conv1[0] * conv2[1]),
        "conv2_b": u(ks[3], (conv2[0],), conv1[0] * conv2[1]),
        "fc1_w": u(ks[4], (fc1, flat), flat),
        "fc1_b": u(ks[5], (fc1,), flat),
        "fc2_w": u(ks[6], (num_classes, fc1), fc1),
        "fc2_b": u(ks[7], (num_classes,), fc1),
    }


def pack_params(params, len_input, conv1=(16, 3, 1), pool1=(2, 2),
                conv2=(32, 4, 2), pool2=(2, 2), fc1=256, num_classes=3):
    """One-time re-layout of PyTorch weights into the fused-matmul layouts."""
    C1, K1, S1 = conv1
    C2, K2, S2 = conv2
    assert S1 == 1 and S2 == 2 and tuple(pool1) == (2, 2) and tuple(pool2) == (2, 2)

    L = len_input
    n1 = (L - K1) // S1 + 1
    n2 = (n1 - pool1[0]) // pool1[1] + 1
    n3 = (n2 - K2) // S2 + 1
    n4 = (n3 - pool2[0]) // pool2[1] + 1
    F1 = fc1
    NP = max(128, _round_up(num_classes, 128))

    Q1 = 2 * n3 + K2 - 2            # pool1 positions actually consumed by conv2
    Q2 = n4                         # pool2 positions consumed by fc1
    P1 = _round_up(Q1 * C1, 128)    # 128-aligned half-width of conv1 output
    P2 = _round_up(Q2 * C2, 128)    # 128-aligned half-width of conv2 output

    # All needed indices stay in range (follows from the floor-div sizes):
    assert 2 * (Q1 - 1) + 1 + (K1 - 1) <= L - 1
    assert 2 * (2 * (Q2 - 1) + 1) + (K2 - 1) <= Q1 - 1

    c1w = np.asarray(params["conv1_w"], np.float32)   # (C1, 1, K1)
    c1b = np.asarray(params["conv1_b"], np.float32)
    c2w = np.asarray(params["conv2_w"], np.float32)   # (C2, C1, K2)
    c2b = np.asarray(params["conv2_b"], np.float32)
    f1w = np.asarray(params["fc1_w"], np.float32)     # (F1, C2*n4)
    f1b = np.asarray(params["fc1_b"], np.float32)
    f2w = np.asarray(params["fc2_w"], np.float32)     # (nc, F1)
    f2b = np.asarray(params["fc2_b"], np.float32)

    # --- conv1 unrolled: column q*C1+c of half h is conv1 output at position
    #     2q+h, channel c; max over halves == pool1. ----------------------------
    W1 = np.zeros((L, 2 * P1), np.float32)
    b1 = np.zeros((1, 2 * P1), np.float32)
    for q in range(Q1):
        for k in range(K1):
            W1[2 * q + k, q * C1:(q + 1) * C1] = c1w[:, 0, k]
            W1[2 * q + 1 + k, P1 + q * C1:P1 + (q + 1) * C1] = c1w[:, 0, k]
        b1[0, q * C1:(q + 1) * C1] = c1b
        b1[0, P1 + q * C1:P1 + (q + 1) * C1] = c1b

    # --- conv2 unrolled: column s*C2+o of half h is conv2 output at position
    #     2s+h, channel o (stride-2 taps read pool1[2r+k]); max over halves ==
    #     pool2. -----------------------------------------------------------------
    W2 = np.zeros((P1, 2 * P2), np.float32)
    b2 = np.zeros((1, 2 * P2), np.float32)
    for s in range(Q2):
        for k in range(K2):
            qe = 2 * (2 * s) + k          # pool1 position feeding r = 2s, tap k
            qo = 2 * (2 * s + 1) + k      # pool1 position feeding r = 2s+1, tap k
            W2[qe * C1:(qe + 1) * C1, s * C2:(s + 1) * C2] = c2w[:, :, k].T
            W2[qo * C1:(qo + 1) * C1, P2 + s * C2:P2 + (s + 1) * C2] = c2w[:, :, k].T
        b2[0, s * C2:(s + 1) * C2] = c2b
        b2[0, P2 + s * C2:P2 + (s + 1) * C2] = c2b

    # --- fc1 with PyTorch's channel-major NCW flatten folded into the rows:
    #     row s*C2 + o  <-  fc1_w[:, o*n4 + s];  padded rows stay zero. ----------
    Wf1 = np.zeros((P2, F1), np.float32)
    Wf1[:n4 * C2, :] = (f1w.reshape(F1, C2, n4)
                           .transpose(2, 1, 0)
                           .reshape(n4 * C2, F1))
    bf1 = f1b.reshape(1, F1)

    # --- fc2: transpose + zero-pad the logit axis to 128 lanes. -----------------
    Wf2 = np.zeros((F1, NP), np.float32)
    Wf2[:, :num_classes] = f2w.T
    bf2 = np.zeros((1, NP), np.float32)
    bf2[0, :num_classes] = f2b

    packed = {
        "w1": jnp.asarray(W1, jnp.float32),     # f32: first layer kept full precision
        "b1": jnp.asarray(b1, jnp.float32),
        "w2": jnp.asarray(W2, jnp.bfloat16),    # pre-cast bf16 (no in-kernel casts)
        "b2": jnp.asarray(b2, jnp.float32),
        "wf1": jnp.asarray(Wf1, jnp.bfloat16),
        "bf1": jnp.asarray(bf1, jnp.float32),
        "wf2": jnp.asarray(Wf2, jnp.bfloat16),
        "bf2": jnp.asarray(bf2, jnp.float32),
    }
    meta = {"len_input": L, "P1": P1, "P2": P2, "NP": NP,
            "num_classes": num_classes, "n1": n1, "n2": n2, "n3": n3, "n4": n4}
    return packed, meta


# ----------------------------------------------------------------------------
# Forward wrapper: one pallas_call, batch grid parallel across TensorCores
# ----------------------------------------------------------------------------
def lenet1d_forward(x, packed, meta, *, batch_tile=512):
    """x: (B, 1, L) float32 -> logits (B, num_classes)."""
    B, cin, L = x.shape
    assert cin == 1 and L == meta["len_input"]
    x2 = x[:, 0, :].astype(jnp.float32)                 # (B, L)

    # Batch tile: multiple of 8 sublanes; bounded so the per-step working set
    # (weights ~1.2 MiB + f32 intermediates ~6*TB*2*P1 bytes) stays far below
    # v7x's 64 MiB VMEM even double-buffered.
    TB = min(_round_up(B, 8), batch_tile)
    B_pad = _round_up(B, TB)
    if B_pad != B:
        x2 = jnp.pad(x2, ((0, B_pad - B), (0, 0)))
    grid = (B_pad // TB,)

    P1, P2, NP = meta["P1"], meta["P2"], meta["NP"]
    kernel = functools.partial(_lenet1d_kernel, p1=P1, p2=P2)

    def _resident(a):   # grid-invariant weight/bias block
        return pl.BlockSpec(a.shape, lambda i: (0, 0))

    out = pl.pallas_call(
        kernel,
        out_shape=jax.ShapeDtypeStruct((B_pad, NP), jnp.float32),
        grid=grid,
        in_specs=[
            pl.BlockSpec((TB, L), lambda i: (i, 0)),
            _resident(packed["w1"]), _resident(packed["b1"]),
            _resident(packed["w2"]), _resident(packed["b2"]),
            _resident(packed["wf1"]), _resident(packed["bf1"]),
            _resident(packed["wf2"]), _resident(packed["bf2"]),
        ],
        out_specs=pl.BlockSpec((TB, NP), lambda i: (i, 0)),
        compiler_params=pltpu.CompilerParams(
            dimension_semantics=("parallel",),
            vmem_limit_bytes=32 * 1024 * 1024),
    )(x2, packed["w1"], packed["b1"], packed["w2"], packed["b2"],
      packed["wf1"], packed["bf1"], packed["wf2"], packed["bf2"])
    return out[:B, :meta["num_classes"]]


# ----------------------------------------------------------------------------
# Pure-JAX (XLA) reference for validation
# ----------------------------------------------------------------------------
def lenet1d_reference(x, params, conv1=(16, 3, 1), pool1=(2, 2),
                      conv2=(32, 4, 2), pool2=(2, 2)):
    B, _, L = x.shape
    C1, K1, S1 = conv1
    C2, K2, S2 = conv2
    x2 = x[:, 0, :]

    n1 = (L - K1) // S1 + 1
    p1 = jnp.stack([x2[:, k:k + S1 * (n1 - 1) + 1:S1] for k in range(K1)], -1)
    h1 = jnp.einsum("bpk,ck->bpc", p1, params["conv1_w"][:, 0, :])
    h1 = h1 + params["conv1_b"]

    n2 = (n1 - pool1[0]) // pool1[1] + 1
    h1p = jnp.maximum(h1[:, 0:2 * n2:2, :], h1[:, 1:2 * n2:2, :])

    n3 = (n2 - K2) // S2 + 1
    p2 = jnp.stack(
        [h1p[:, k:k + S2 * (n3 - 1) + 1:S2, :] for k in range(K2)], axis=2)
    h2 = jnp.einsum("bpkc,ock->bpo", p2, params["conv2_w"]) + params["conv2_b"]

    n4 = (n3 - pool2[0]) // pool2[1] + 1
    h2p = jnp.maximum(h2[:, 0:2 * n4:2, :], h2[:, 1:2 * n4:2, :])

    feat = jnp.transpose(h2p, (0, 2, 1)).reshape(B, -1)      # NCW flatten
    z = jnp.maximum(feat @ params["fc1_w"].T + params["fc1_b"], 0.0)
    return z @ params["fc2_w"].T + params["fc2_b"]


# ----------------------------------------------------------------------------
if __name__ == "__main__":
    key = jax.random.PRNGKey(0)
    k_x, k_p = jax.random.split(key)

    B, L = 2, 64
    x = jax.random.normal(k_x, (B, 1, L), dtype=jnp.float32)

    params = init_params(k_p, L)
    packed, meta = pack_params(params, L)     # one-time weight packing
    # For L=64: n1=62, n2=31, n3=14, n4=7, P1=512, P2=256

    fwd = jax.jit(lambda xx: lenet1d_forward(xx, packed, meta))
    out = jax.block_until_ready(fwd(x))

    assert out.shape == (B, 3), out.shape
    assert bool(jnp.all(jnp.isfinite(out)))

    # Validate against the pure-JAX reference (relaxed tolerance: conv2/fc use
    # bf16 MXU operands with f32 accumulation).
    ref = lenet1d_reference(x, params)
    assert jnp.allclose(out, ref, atol=5e-2, rtol=5e-2), (out, ref)

    print("KERNEL_OK")
</pallas_src>

<mosaic_0001>
module attributes {stable_mosaic.version = 11 : i64} {
  func.func @_lenet1d_kernel(%arg0: i32, %arg1: memref<8x64xf32, #tpu.memory_space<vmem>>, %arg2: memref<64x1024xf32, #tpu.memory_space<vmem>>, %arg3: memref<1x1024xf32, #tpu.memory_space<vmem>>, %arg4: memref<512x512xbf16, #tpu.memory_space<vmem>>, %arg5: memref<1x512xf32, #tpu.memory_space<vmem>>, %arg6: memref<256x256xbf16, #tpu.memory_space<vmem>>, %arg7: memref<1x256xf32, #tpu.memory_space<vmem>>, %arg8: memref<256x128xbf16, #tpu.memory_space<vmem>>, %arg9: memref<1x128xf32, #tpu.memory_space<vmem>>, %arg10: memref<8x128xf32, #tpu.memory_space<vmem>>) attributes {dimension_semantics = [#tpu.dimension_semantics<parallel>], iteration_bounds = array<i64: 1>, scalar_prefetch = 0 : i64, scratch_operands = 0 : i64, tpu.core_type = #tpu.core_type<tc>, window_params = [{transform_indices = @transform_0, window_bounds = array<i64: 8, 64>}, {pipeline_mode = #tpu.pipeline_mode<synchronous>, transform_indices = @transform_1, window_bounds = array<i64: 64, 1024>}, {pipeline_mode = #tpu.pipeline_mode<synchronous>, transform_indices = @transform_2, window_bounds = array<i64: 1, 1024>}, {pipeline_mode = #tpu.pipeline_mode<synchronous>, transform_indices = @transform_3, window_bounds = array<i64: 512, 512>}, {pipeline_mode = #tpu.pipeline_mode<synchronous>, transform_indices = @transform_4, window_bounds = array<i64: 1, 512>}, {pipeline_mode = #tpu.pipeline_mode<synchronous>, transform_indices = @transform_5, window_bounds = array<i64: 256, 256>}, {pipeline_mode = #tpu.pipeline_mode<synchronous>, transform_indices = @transform_6, window_bounds = array<i64: 1, 256>}, {pipeline_mode = #tpu.pipeline_mode<synchronous>, transform_indices = @transform_7, window_bounds = array<i64: 256, 128>}, {pipeline_mode = #tpu.pipeline_mode<synchronous>, transform_indices = @transform_8, window_bounds = array<i64: 1, 128>}, {transform_indices = @transform_9, window_bounds = array<i64: 8, 128>}]} {
    %c0 = arith.constant 0 : index
    %c0_0 = arith.constant 0 : index
    %0 = vector.load %arg1[%c0, %c0_0] : memref<8x64xf32, #tpu.memory_space<vmem>>, vector<8x64xf32>
    %c0_1 = arith.constant 0 : index
    %c0_2 = arith.constant 0 : index
    %1 = vector.load %arg2[%c0_1, %c0_2] : memref<64x1024xf32, #tpu.memory_space<vmem>>, vector<64x1024xf32>
    %cst = arith.constant dense<0.000000e+00> : vector<8x1024xf32>
    %2 = tpu.matmul %0, %1, %cst {dimension_numbers = #tpu.dot_dimension_numbers<[1], [0], [0], [1], [0, 0, 1, 1], [], []>} : vector<8x64xf32>, vector<64x1024xf32>, vector<8x1024xf32> -> vector<8x1024xf32>
    %c0_3 = arith.constant 0 : index
    %c0_4 = arith.constant 0 : index
    %3 = vector.load %arg3[%c0_3, %c0_4] : memref<1x1024xf32, #tpu.memory_space<vmem>>, vector<1x1024xf32>
    %4 = vector.broadcast %3 : vector<1x1024xf32> to vector<8x1024xf32>
    %5 = arith.addf %2, %4 : vector<8x1024xf32>
    %6 = vector.extract_strided_slice %5 {offsets = [0, 0], sizes = [8, 512], strides = [1, 1]} : vector<8x1024xf32> to vector<8x512xf32>
    %7 = vector.extract_strided_slice %5 {offsets = [0, 512], sizes = [8, 512], strides = [1, 1]} : vector<8x1024xf32> to vector<8x512xf32>
    %8 = arith.maximumf %6, %7 : vector<8x512xf32>
    %9 = arith.truncf %8 : vector<8x512xf32> to vector<8x512xbf16>
    %c0_5 = arith.constant 0 : index
    %c0_6 = arith.constant 0 : index
    %10 = vector.load %arg4[%c0_5, %c0_6] : memref<512x512xbf16, #tpu.memory_space<vmem>>, vector<512x512xbf16>
    %cst_7 = arith.constant dense<0.000000e+00> : vector<8x512xf32>
    %11 = tpu.matmul %9, %10, %cst_7 {dimension_numbers = #tpu.dot_dimension_numbers<[1], [0], [0], [1], [0, 0, 1, 1], [], []>} : vector<8x512xbf16>, vector<512x512xbf16>, vector<8x512xf32> -> vector<8x512xf32>
    %c0_8 = arith.constant 0 : index
    %c0_9 = arith.constant 0 : index
    %12 = vector.load %arg5[%c0_8, %c0_9] : memref<1x512xf32, #tpu.memory_space<vmem>>, vector<1x512xf32>
    %13 = vector.broadcast %12 : vector<1x512xf32> to vector<8x512xf32>
    %14 = arith.addf %11, %13 : vector<8x512xf32>
    %15 = vector.extract_strided_slice %14 {offsets = [0, 0], sizes = [8, 256], strides = [1, 1]} : vector<8x512xf32> to vector<8x256xf32>
    %16 = vector.extract_strided_slice %14 {offsets = [0, 256], sizes = [8, 256], strides = [1, 1]} : vector<8x512xf32> to vector<8x256xf32>
    %17 = arith.maximumf %15, %16 : vector<8x256xf32>
    %18 = arith.truncf %17 : vector<8x256xf32> to vector<8x256xbf16>
    %c0_10 = arith.constant 0 : index
    %c0_11 = arith.constant 0 : index
    %19 = vector.load %arg6[%c0_10, %c0_11] : memref<256x256xbf16, #tpu.memory_space<vmem>>, vector<256x256xbf16>
    %cst_12 = arith.constant dense<0.000000e+00> : vector<8x256xf32>
    %20 = tpu.matmul %18, %19, %cst_12 {dimension_numbers = #tpu.dot_dimension_numbers<[1], [0], [0], [1], [0, 0, 1, 1], [], []>} : vector<8x256xbf16>, vector<256x256xbf16>, vector<8x256xf32> -> vector<8x256xf32>
    %c0_13 = arith.constant 0 : index
    %c0_14 = arith.constant 0 : index
    %21 = vector.load %arg7[%c0_13, %c0_14] : memref<1x256xf32, #tpu.memory_space<vmem>>, vector<1x256xf32>
    %22 = vector.broadcast %21 : vector<1x256xf32> to vector<8x256xf32>
    %23 = arith.addf %20, %22 : vector<8x256xf32>
    %cst_15 = arith.constant 0.000000e+00 : f32
    %24 = vector.broadcast %cst_15 : f32 to vector<8x256xf32>
    %25 = arith.maximumf %23, %24 : vector<8x256xf32>
    %26 = arith.truncf %25 : vector<8x256xf32> to vector<8x256xbf16>
    %c0_16 = arith.constant 0 : index
    %c0_17 = arith.constant 0 : index
    %27 = vector.load %arg8[%c0_16, %c0_17] : memref<256x128xbf16, #tpu.memory_space<vmem>>, vector<256x128xbf16>
    %cst_18 = arith.constant dense<0.000000e+00> : vector<8x128xf32>
    %28 = tpu.matmul %26, %27, %cst_18 {dimension_numbers = #tpu.dot_dimension_numbers<[1], [0], [0], [1], [0, 0, 1, 1], [], []>} : vector<8x256xbf16>, vector<256x128xbf16>, vector<8x128xf32> -> vector<8x128xf32>
    %c0_19 = arith.constant 0 : index
    %c0_20 = arith.constant 0 : index
    %29 = vector.load %arg9[%c0_19, %c0_20] : memref<1x128xf32, #tpu.memory_space<vmem>>, vector<1x128xf32>
    %30 = vector.broadcast %29 : vector<1x128xf32> to vector<8x128xf32>
    %31 = arith.addf %28, %30 : vector<8x128xf32>
    %c0_21 = arith.constant 0 : index
    %c0_22 = arith.constant 0 : index
    %32 = vector.load %arg10[%c0_21, %c0_22] : memref<8x128xf32, #tpu.memory_space<vmem>>, vector<8x128xf32>
    tpu.vector_store %arg10[%c0_21, %c0_22], %31 {strides = array<i32>} : memref<8x128xf32, #tpu.memory_space<vmem>>, vector<8x128xf32>,
    return
  }
  func.func @transform_0(%arg0: i32) -> (i32, i32) {
    %c0_i32 = arith.constant 0 : i32
    %c0_i32_0 = arith.constant 0 : i32
    return %arg0, %c0_i32 : i32, i32
  }
  func.func @transform_1(%arg0: i32) -> (i32, i32) {
    %c0_i32 = arith.constant 0 : i32
    %c0_i32_0 = arith.constant 0 : i32
    %c0_i32_1 = arith.constant 0 : i32
    return %c0_i32, %c0_i32_0 : i32, i32
  }
  func.func @transform_2(%arg0: i32) -> (i32, i32) {
    %c0_i32 = arith.constant 0 : i32
    %c0_i32_0 = arith.constant 0 : i32
    %c0_i32_1 = arith.constant 0 : i32
    return %c0_i32, %c0_i32_0 : i32, i32
  }
  func.func @transform_3(%arg0: i32) -> (i32, i32) {
    %c0_i32 = arith.constant 0 : i32
    %c0_i32_0 = arith.constant 0 : i32
    %c0_i32_1 = arith.constant 0 : i32
    return %c0_i32, %c0_i32_0 : i32, i32
  }
  func.func @transform_4(%arg0: i32) -> (i32, i32) {
    %c0_i32 = arith.constant 0 : i32
    %c0_i32_0 = arith.constant 0 : i32
    %c0_i32_1 = arith.constant 0 : i32
    return %c0_i32, %c0_i32_0 : i32, i32
  }
  func.func @transform_5(%arg0: i32) -> (i32, i32) {
    %c0_i32 = arith.constant 0 : i32
    %c0_i32_0 = arith.constant 0 : i32
    %c0_i32_1 = arith.constant 0 : i32
    return %c0_i32, %c0_i32_0 : i32, i32
  }
  func.func @transform_6(%arg0: i32) -> (i32, i32) {
    %c0_i32 = arith.constant 0 : i32
    %c0_i32_0 = arith.constant 0 : i32
    %c0_i32_1 = arith.constant 0 : i32
    return %c0_i32, %c0_i32_0 : i32, i32
  }
  func.func @transform_7(%arg0: i32) -> (i32, i32) {
    %c0_i32 = arith.constant 0 : i32
    %c0_i32_0 = arith.constant 0 : i32
    %c0_i32_1 = arith.constant 0 : i32
    return %c0_i32, %c0_i32_0 : i32, i32
  }
  func.func @transform_8(%arg0: i32) -> (i32, i32) {
    %c0_i32 = arith.constant 0 : i32
    %c0_i32_0 = arith.constant 0 : i32
    %c0_i32_1 = arith.constant 0 : i32
    return %c0_i32, %c0_i32_0 : i32, i32
  }
  func.func @transform_9(%arg0: i32) -> (i32, i32) {
    %c0_i32 = arith.constant 0 : i32
    %c0_i32_0 = arith.constant 0 : i32
    return %arg0, %c0_i32 : i32, i32
  }
}

</mosaic_0001>

<llo_original>
// kernel: _lambda_.1
$region0: #{_lambda_.1}
  #allocation0 [shape = 'u32[]', space=smem, size = 0x4, offset = 0x4, fixed_abs, tag = 'smem constant byte address 0x4 - core index']
  #allocation1 [shape = 'u32[144,128]{1,0:T(1,128)}', space=vmem, size = 0x12000, scoped, tag = 'internal scratch']
  %s0 = inlined_call_operand.vmem [shape: f32[8,64], index: 0, kind: input, shape index: {}]
  %s1 = inlined_call_operand.vmem [shape: f32[64,1024], index: 1, kind: input, shape index: {}]
  %s2 = inlined_call_operand.vmem [shape: f32[1,1024], index: 2, kind: input, shape index: {}]
  %s3 = inlined_call_operand.vmem [shape: bf16[512,512], index: 3, kind: input, shape index: {}]
  %s4 = inlined_call_operand.vmem [shape: f32[1,512], index: 4, kind: input, shape index: {}]
  %s5 = inlined_call_operand.vmem [shape: bf16[256,256], index: 5, kind: input, shape index: {}]
  %s6 = inlined_call_operand.vmem [shape: f32[1,256], index: 6, kind: input, shape index: {}]
  %s7 = inlined_call_operand.vmem [shape: bf16[256,128], index: 7, kind: input, shape index: {}]
  %s8 = inlined_call_operand.vmem [shape: f32[1,128], index: 8, kind: input, shape index: {}]
  %s9 = inlined_call_operand.vmem [shape: f32[8,128], index: 9, kind: output, shape index: {}]
  %s10 = sld [smem:[#allocation0]]
  $region46: #{_lambda_.1} parent=0
    _
  %s12 = ssub.s32 1, %s10
  %s13 = scalar_select 0, %s12, %s10
  // Predicated region
  $region2: #{_lambda_.1} parent=0 // pred_check
    _
  $region3: #{_lambda_.1} parent=0 // pred_check_branch
    %15 = sbr.rel (0) target = $region5
  $region4: #{_lambda_.1} parent=0 // pred_region
    _
  $region5: #{_lambda_.1} parent=0 // pred_fallthru
    _
  // Predicated region
  $region6: #{_lambda_.1} parent=0 // pred_check
    _
  $region7: #{_lambda_.1} parent=0 // pred_check_branch
    %17 = sbr.rel (0) target = $region9
  $region8: #{_lambda_.1} parent=0 // pred_region
    _
  $region9: #{_lambda_.1} parent=0 // pred_fallthru
    _
  // Predicated region
  $region10: #{_lambda_.1} parent=0 // pred_check
    _
  $region11: #{_lambda_.1} parent=0 // pred_check_branch
    %19 = sbr.rel (0) target = $region13
  $region12: #{_lambda_.1} parent=0 // pred_region
    _
  $region13: #{_lambda_.1} parent=0 // pred_fallthru
    _
  // Predicated region
  $region14: #{_lambda_.1} parent=0 // pred_check
    _
  $region15: #{_lambda_.1} parent=0 // pred_check_branch
    %21 = sbr.rel (0) target = $region17
  $region16: #{_lambda_.1} parent=0 // pred_region
    _
  $region17: #{_lambda_.1} parent=0 // pred_fallthru
    _
  // Predicated region
  $region18: #{_lambda_.1} parent=0 // pred_check
    _
  $region19: #{_lambda_.1} parent=0 // pred_check_branch
    %23 = sbr.rel (0) target = $region21
  $region20: #{_lambda_.1} parent=0 // pred_region
    _
  $region21: #{_lambda_.1} parent=0 // pred_fallthru
    _
  // Predicated region
  $region22: #{_lambda_.1} parent=0 // pred_check
    _
  $region23: #{_lambda_.1} parent=0 // pred_check_branch
    %25 = sbr.rel (0) target = $region25
  $region24: #{_lambda_.1} parent=0 // pred_region
    _
  $region25: #{_lambda_.1} parent=0 // pred_fallthru
    _
  // Predicated region
  $region26: #{_lambda_.1} parent=0 // pred_check
    _
  $region27: #{_lambda_.1} parent=0 // pred_check_branch
    %27 = sbr.rel (0) target = $region29
  $region28: #{_lambda_.1} parent=0 // pred_region
    _
  $region29: #{_lambda_.1} parent=0 // pred_fallthru
    _
  // Predicated region
  $region30: #{_lambda_.1} parent=0 // pred_check
    _
  $region31: #{_lambda_.1} parent=0 // pred_check_branch
    %29 = sbr.rel (0) target = $region33
  $region32: #{_lambda_.1} parent=0 // pred_region
    _
  $region33: #{_lambda_.1} parent=0 // pred_fallthru
    _
  // Predicated region
  $region34: #{_lambda_.1} parent=0 // pred_check
    _
  $region35: #{_lambda_.1} parent=0 // pred_check_branch
    %31 = sbr.rel (0) target = $region37
  $region36: #{_lambda_.1} parent=0 // pred_region
    _
  $region37: #{_lambda_.1} parent=0 // pred_fallthru
    _
  %v33 = vld [vmem:[%s0] sm:$0xff]
  %v34 = vld [vmem:[%s1] sm:$0xff]
  %v35 = vld [vmem:[%s1 + $0x8] sm:$0xff]
  %v36 = vld [vmem:[%s1 + $0x10] sm:$0xff]
  %v37 = vld [vmem:[%s1 + $0x18] sm:$0xff]
  %v38 = vld [vmem:[%s1 + $0x20] sm:$0xff]
  %v39 = vld [vmem:[%s1 + $0x28] sm:$0xff]
  %v40 = vld [vmem:[%s1 + $0x30] sm:$0xff]
  %v41 = vld [vmem:[%s1 + $0x38] sm:$0xff]
  %v42 = vld [vmem:[%s1 + $0x40] sm:$0xff]
  %v43 = vld [vmem:[%s1 + $0x48] sm:$0xff]
  %v44 = vld [vmem:[%s1 + $0x50] sm:$0xff]
  %v45 = vld [vmem:[%s1 + $0x58] sm:$0xff]
  %v46 = vld [vmem:[%s1 + $0x60] sm:$0xff]
  %v47 = vld [vmem:[%s1 + $0x68] sm:$0xff]
  %v48 = vld [vmem:[%s1 + $0x70] sm:$0xff]
  %v49 = vld [vmem:[%s1 + $0x78] sm:$0xff]
  %v50 = vld [vmem:[%s1 + $0x80] sm:$0xff]
  %v51 = vld [vmem:[%s1 + $0x88] sm:$0xff]
  %v52 = vld [vmem:[%s1 + $0x90] sm:$0xff]
  %v53 = vld [vmem:[%s1 + $0x98] sm:$0xff]
  %v54 = vld [vmem:[%s1 + $0xa0] sm:$0xff]
  %v55 = vld [vmem:[%s1 + $0xa8] sm:$0xff]
  %v56 = vld [vmem:[%s1 + $0xb0] sm:$0xff]
  %v57 = vld [vmem:[%s1 + $0xb8] sm:$0xff]
  %v58 = vld [vmem:[%s1 + $0xc0] sm:$0xff]
  %v59 = vld [vmem:[%s1 + $0xc8] sm:$0xff]
  %v60 = vld [vmem:[%s1 + $0xd0] sm:$0xff]
  %v61 = vld [vmem:[%s1 + $0xd8] sm:$0xff]
  %v62 = vld [vmem:[%s1 + $0xe0] sm:$0xff]
  %v63 = vld [vmem:[%s1 + $0xe8] sm:$0xff]
  %v64 = vld [vmem:[%s1 + $0xf0] sm:$0xff]
  %v65 = vld [vmem:[%s1 + $0xf8] sm:$0xff]
  %v66 = vld [vmem:[%s1 + $0x100] sm:$0xff]
  %v67 = vld [vmem:[%s1 + $0x108] sm:$0xff]
  %v68 = vld [vmem:[%s1 + $0x110] sm:$0xff]
  %v69 = vld [vmem:[%s1 + $0x118] sm:$0xff]
  %v70 = vld [vmem:[%s1 + $0x120] sm:$0xff]
  %v71 = vld [vmem:[%s1 + $0x128] sm:$0xff]
  %v72 = vld [vmem:[%s1 + $0x130] sm:$0xff]
  %v73 = vld [vmem:[%s1 + $0x138] sm:$0xff]
  %v74 = vld [vmem:[%s1 + $0x140] sm:$0xff]
  %v75 = vld [vmem:[%s1 + $0x148] sm:$0xff]
  %v76 = vld [vmem:[%s1 + $0x150] sm:$0xff]
  %v77 = vld [vmem:[%s1 + $0x158] sm:$0xff]
  %v78 = vld [vmem:[%s1 + $0x160] sm:$0xff]
  %v79 = vld [vmem:[%s1 + $0x168] sm:$0xff]
  %v80 = vld [vmem:[%s1 + $0x170] sm:$0xff]
  %v81 = vld [vmem:[%s1 + $0x178] sm:$0xff]
  %v82 = vld [vmem:[%s1 + $0x180] sm:$0xff]
  %v83 = vld [vmem:[%s1 + $0x188] sm:$0xff]
  %v84 = vld [vmem:[%s1 + $0x190] sm:$0xff]
  %v85 = vld [vmem:[%s1 + $0x198] sm:$0xff]
  %v86 = vld [vmem:[%s1 + $0x1a0] sm:$0xff]
  %v87 = vld [vmem:[%s1 + $0x1a8] sm:$0xff]
  %v88 = vld [vmem:[%s1 + $0x1b0] sm:$0xff]
  %v89 = vld [vmem:[%s1 + $0x1b8] sm:$0xff]
  %v90 = vld [vmem:[%s1 + $0x1c0] sm:$0xff]
  %v91 = vld [vmem:[%s1 + $0x1c8] sm:$0xff]
  %v92 = vld [vmem:[%s1 + $0x1d0] sm:$0xff]
  %v93 = vld [vmem:[%s1 + $0x1d8] sm:$0xff]
  %v94 = vld [vmem:[%s1 + $0x1e0] sm:$0xff]
  %v95 = vld [vmem:[%s1 + $0x1e8] sm:$0xff]
  %v96 = vld [vmem:[%s1 + $0x1f0] sm:$0xff]
  %v97 = vld [vmem:[%s1 + $0x1f8] sm:$0xff]
  %v98 = vld [vmem:[%s2] sm:$0xff]
  %v100 = vlaneseq
  %v101 = vshrl.u32 %v100, 7
  %v102 = vsub.s32 0, %v101
  %v103 = vrot.slane %v98, %v102
  %v104 = vlaneseq
  %v105 = vshrl.u32 %v104, 7
  %v106 = vsub.s32 1, %v105
  %v107 = vrot.slane %v98, %v106
  %v108 = vlaneseq
  %v109 = vshrl.u32 %v108, 7
  %v110 = vsub.s32 2, %v109
  %v111 = vrot.slane %v98, %v110
  %v112 = vlaneseq
  %v113 = vshrl.u32 %v112, 7
  %v114 = vsub.s32 3, %v113
  %v115 = vrot.slane %v98, %v114
  %v116 = vlaneseq
  %v117 = vshrl.u32 %v116, 7
  %v118 = vsub.s32 4, %v117
  %v119 = vrot.slane %v98, %v118
  %v120 = vlaneseq
  %v121 = vshrl.u32 %v120, 7
  %v122 = vsub.s32 5, %v121
  %v123 = vrot.slane %v98, %v122
  %v124 = vlaneseq
  %v125 = vshrl.u32 %v124, 7
  %v126 = vsub.s32 6, %v125
  %v127 = vrot.slane %v98, %v126
  %v128 = vlaneseq
  %v129 = vshrl.u32 %v128, 7
  %v130 = vsub.s32 7, %v129
  %v131 = vrot.slane %v98, %v130
  %vm140 = vcmask 523264
  %v142 = vsel %vm140, %v33, 0
  %144 = vmatprep.subr.mxu0 %v35
  %145 = vmatpush1.msra.mxu0 %v34
  %146 = vmatprep.subr.mxu0 %v43
  %147 = vmatpush1.msra.mxu0 %v42
  %148 = vmatprep.subr.mxu0 %v51
  %149 = vmatpush1.msra.mxu0 %v50
  %150 = vmatprep.subr.mxu0 %v59
  %151 = vmatpush1.msra.mxu0 %v58
  %152 = vmatprep.subr.mxu0 %v67
  %153 = vmatpush1.msra.mxu0 %v66
  %154 = vmatprep.subr.mxu0 %v75
  %155 = vmatpush1.msra.mxu0 %v74
  %156 = vmatprep.subr.mxu0 %v83
  %157 = vmatpush1.msra.mxu0 %v82
  %158 = vmatprep.subr.mxu0 %v91
  %159 = vmatpush1.msra.mxu0 %v90
  %160 = vmatprep.subr.mxu0 0.0
  %161 = vmatpush1.msra.mxu0 0.0
  %162 = vmatprep.subr.mxu0 0.0
  %163 = vmatpush1.msra.mxu0 0.0
  %164 = vmatprep.subr.mxu0 0.0
  %165 = vmatpush1.msra.mxu0 0.0
  %166 = vmatprep.subr.mxu0 0.0
  %167 = vmatpush1.msra.mxu0 0.0
  %168 = vmatprep.subr.mxu0 0.0
  %169 = vmatpush1.msra.mxu0 0.0
  %170 = vmatprep.subr.mxu0 0.0
  %171 = vmatpush1.msra.mxu0 0.0
  %172 = vmatprep.subr.mxu0 0.0
  %173 = vmatpush1.msra.mxu0 0.0
  %174 = vmatprep.subr.mxu0 0.0
  %175 = vmatpush1.msra.mxu0 0.0
  %176 = vmatprep.subr.mxu0 0.0
  %177 = vmatpush1.msra.mxu0 0.0
  %178 = vmatprep.subr.mxu0 0.0
  %179 = vmatpush1.msra.mxu0 0.0
  %180 = vmatprep.subr.mxu0 0.0
  %181 = vmatpush1.msra.mxu0 0.0
  %182 = vmatprep.subr.mxu0 0.0
  %183 = vmatpush1.msra.mxu0 0.0
  %184 = vmatprep.subr.mxu0 0.0
  %185 = vmatpush1.msra.mxu0 0.0
  %186 = vmatprep.subr.mxu0 0.0
  %187 = vmatpush1.msra.mxu0 0.0
  %188 = vmatprep.subr.mxu0 0.0
  %189 = vmatpush1.msra.mxu0 0.0
  %190 = vmatprep.subr.mxu0 0.0
  %191 = vmatpush1.msra.mxu0 0.0
  %192 = vmatprep.subr.mxu0 0.0
  %193 = vmatpush1.msra.mxu0 0.0
  %194 = vmatprep.subr.mxu0 0.0
  %195 = vmatpush1.msra.mxu0 0.0
  %196 = vmatprep.subr.mxu0 0.0
  %197 = vmatpush1.msra.mxu0 0.0
  %198 = vmatprep.subr.mxu0 0.0
  %199 = vmatpush1.msra.mxu0 0.0
  %200 = vmatprep.subr.mxu0 0.0
  %201 = vmatpush1.msra.mxu0 0.0
  %202 = vmatprep.subr.mxu0 0.0
  %203 = vmatpush1.msra.mxu0 0.0
  %204 = vmatprep.subr.mxu0 0.0
  %205 = vmatpush1.msra.mxu0 0.0
  %206 = vmatprep.subr.mxu0 0.0
  %207 = vmatpush1.msra.mxu0 0.0
  %208 = vmatprep.mubr.f32.mxu0 0.0
  %209 = vmatmul.mubr.f32.gmra.mrb[0].mxu0 %v142
  %v210 = vpop.f32.mrb[0].mxu0
  %v211 = vadd.f32 %v103, %v210
  %v212 = vpop.f32.mrb[0].mxu0
  %v213 = vadd.f32 %v107, %v212
  %214 = vdwg.mxu0
  %215 = vmatprep.subr.mxu0 %v37
  %216 = vmatpush1.msra.mxu0 %v36
  %217 = vmatprep.subr.mxu0 %v45
  %218 = vmatpush1.msra.mxu0 %v44
  %219 = vmatprep.subr.mxu0 %v53
  %220 = vmatpush1.msra.mxu0 %v52
  %221 = vmatprep.subr.mxu0 %v61
  %222 = vmatpush1.msra.mxu0 %v60
  %223 = vmatprep.subr.mxu0 %v69
  %224 = vmatpush1.msra.mxu0 %v68
  %225 = vmatprep.subr.mxu0 %v77
  %226 = vmatpush1.msra.mxu0 %v76
  %227 = vmatprep.subr.mxu0 %v85
  %228 = vmatpush1.msra.mxu0 %v84
  %229 = vmatprep.subr.mxu0 %v93
  %230 = vmatpush1.msra.mxu0 %v92
  %231 = vmatprep.subr.mxu0 0.0
  %232 = vmatpush1.msra.mxu0 0.0
  %233 = vmatprep.subr.mxu0 0.0
  %234 = vmatpush1.msra.mxu0 0.0
  %235 = vmatprep.subr.mxu0 0.0
  %236 = vmatpush1.msra.mxu0 0.0
  %237 = vmatprep.subr.mxu0 0.0
  %238 = vmatpush1.msra.mxu0 0.0
  %239 = vmatprep.subr.mxu0 0.0
  %240 = vmatpush1.msra.mxu0 0.0
  %241 = vmatprep.subr.mxu0 0.0
  %242 = vmatpush1.msra.mxu0 0.0
  %243 = vmatprep.subr.mxu0 0.0
  %244 = vmatpush1.msra.mxu0 0.0
  %245 = vmatprep.subr.mxu0 0.0
  %246 = vmatpush1.msra.mxu0 0.0
  %247 = vmatprep.subr.mxu0 0.0
  %248 = vmatpush1.msra.mxu0 0.0
  %249 = vmatprep.subr.mxu0 0.0
  %250 = vmatpush1.msra.mxu0 0.0
  %251 = vmatprep.subr.mxu0 0.0
  %252 = vmatpush1.msra.mxu0 0.0
  %253 = vmatprep.subr.mxu0 0.0
  %254 = vmatpush1.msra.mxu0 0.0
  %255 = vmatprep.subr.mxu0 0.0
  %256 = vmatpush1.msra.mxu0 0.0
  %257 = vmatprep.subr.mxu0 0.0
  %258 = vmatpush1.msra.mxu0 0.0
  %259 = vmatprep.subr.mxu0 0.0
  %260 = vmatpush1.msra.mxu0 0.0
  %261 = vmatprep.subr.mxu0 0.0
  %262 = vmatpush1.msra.mxu0 0.0
  %263 = vmatprep.subr.mxu0 0.0
  %264 = vmatpush1.msra.mxu0 0.0
  %265 = vmatprep.subr.mxu0 0.0
  %266 = vmatpush1.msra.mxu0 0.0
  %267 = vmatprep.subr.mxu0 0.0
  %268 = vmatpush1.msra.mxu0 0.0
  %269 = vmatprep.subr.mxu0 0.0
  %270 = vmatpush1.msra.mxu0 0.0
  %271 = vmatprep.subr.mxu0 0.0
  %272 = vmatpush1.msra.mxu0 0.0
  %273 = vmatprep.subr.mxu0 0.0
  %274 = vmatpush1.msra.mxu0 0.0
  %275 = vmatprep.subr.mxu0 0.0
  %276 = vmatpush1.msra.mxu0 0.0
  %277 = vmatprep.subr.mxu0 0.0
  %278 = vmatpush1.msra.mxu0 0.0
  %279 = vmatprep.mubr.f32.mxu0 0.0
  %280 = vmatmul.mubr.f32.gmra.mrb[0].mxu0 %v142
  %v281 = vpop.f32.mrb[0].mxu0
  %v282 = vadd.f32 %v111, %v281
  %v283 = vpop.f32.mrb[0].mxu0
  %v284 = vadd.f32 %v115, %v283
  %285 = vdwg.mxu0
  %286 = vmatprep.subr.mxu0 %v39
  %287 = vmatpush1.msra.mxu0 %v38
  %288 = vmatprep.subr.mxu0 %v47
  %289 = vmatpush1.msra.mxu0 %v46
  %290 = vmatprep.subr.mxu0 %v55
  %291 = vmatpush1.msra.mxu0 %v54
  %292 = vmatprep.subr.mxu0 %v63
  %293 = vmatpush1.msra.mxu0 %v62
  %294 = vmatprep.subr.mxu0 %v71
  %295 = vmatpush1.msra.mxu0 %v70
  %296 = vmatprep.subr.mxu0 %v79
  %297 = vmatpush1.msra.mxu0 %v78
  %298 = vmatprep.subr.mxu0 %v87
  %299 = vmatpush1.msra.mxu0 %v86
  %300 = vmatprep.subr.mxu0 %v95
  %301 = vmatpush1.msra.mxu0 %v94
  %302 = vmatprep.subr.mxu0 0.0
  %303 = vmatpush1.msra.mxu0 0.0
  %304 = vmatprep.subr.mxu0 0.0
  %305 = vmatpush1.msra.mxu0 0.0
  %306 = vmatprep.subr.mxu0 0.0
  %307 = vmatpush1.msra.mxu0 0.0
  %308 = vmatprep.subr.mxu0 0.0
  %309 = vmatpush1.msra.mxu0 0.0
  %310 = vmatprep.subr.mxu0 0.0
  %311 = vmatpush1.msra.mxu0 0.0
  %312 = vmatprep.subr.mxu0 0.0
  %313 = vmatpush1.msra.mxu0 0.0
  %314 = vmatprep.subr.mxu0 0.0
  %315 = vmatpush1.msra.mxu0 0.0
  %316 = vmatprep.subr.mxu0 0.0
  %317 = vmatpush1.msra.mxu0 0.0
  %318 = vmatprep.subr.mxu0 0.0
  %319 = vmatpush1.msra.mxu0 0.0
  %320 = vmatprep.subr.mxu0 0.0
  %321 = vmatpush1.msra.mxu0 0.0
  %322 = vmatprep.subr.mxu0 0.0
  %323 = vmatpush1.msra.mxu0 0.0
  %324 = vmatprep.subr.mxu0 0.0
  %325 = vmatpush1.msra.mxu0 0.0
  %326 = vmatprep.subr.mxu0 0.0
  %327 = vmatpush1.msra.mxu0 0.0
  %328 = vmatprep.subr.mxu0 0.0
  %329 = vmatpush1.msra.mxu0 0.0
  %330 = vmatprep.subr.mxu0 0.0
  %331 = vmatpush1.msra.mxu0 0.0
  %332 = vmatprep.subr.mxu0 0.0
  %333 = vmatpush1.msra.mxu0 0.0
  %334 = vmatprep.subr.mxu0 0.0
  %335 = vmatpush1.msra.mxu0 0.0
  %336 = vmatprep.subr.mxu0 0.0
  %337 = vmatpush1.msra.mxu0 0.0
  %338 = vmatprep.subr.mxu0 0.0
  %339 = vmatpush1.msra.mxu0 0.0
  %340 = vmatprep.subr.mxu0 0.0
  %341 = vmatpush1.msra.mxu0 0.0
  %342 = vmatprep.subr.mxu0 0.0
  %343 = vmatpush1.msra.mxu0 0.0
  %344 = vmatprep.subr.mxu0 0.0
  %345 = vmatpush1.msra.mxu0 0.0
  %346 = vmatprep.subr.mxu0 0.0
  %347 = vmatpush1.msra.mxu0 0.0
  %348 = vmatprep.subr.mxu0 0.0
  %349 = vmatpush1.msra.mxu0 0.0
  %350 = vmatprep.mubr.f32.mxu0 0.0
  %351 = vmatmul.mubr.f32.gmra.mrb[0].mxu0 %v142
  %v352 = vpop.f32.mrb[0].mxu0
  %v353 = vadd.f32 %v119, %v352
  %v354 = vpop.f32.mrb[0].mxu0
  %v355 = vadd.f32 %v123, %v354
  %356 = vdwg.mxu0
  %357 = vmatprep.subr.mxu0 %v41
  %358 = vmatpush1.msra.mxu0 %v40
  %359 = vmatprep.subr.mxu0 %v49
  %360 = vmatpush1.msra.mxu0 %v48
  %361 = vmatprep.subr.mxu0 %v57
  %362 = vmatpush1.msra.mxu0 %v56
  %363 = vmatprep.subr.mxu0 %v65
  %364 = vmatpush1.msra.mxu0 %v64
  %365 = vmatprep.subr.mxu0 %v73
  %366 = vmatpush1.msra.mxu0 %v72
  %367 = vmatprep.subr.mxu0 %v81
  %368 = vmatpush1.msra.mxu0 %v80
  %369 = vmatprep.subr.mxu0 %v89
  %370 = vmatpush1.msra.mxu0 %v88
  %371 = vmatprep.subr.mxu0 %v97
  %372 = vmatpush1.msra.mxu0 %v96
  %373 = vmatprep.subr.mxu0 0.0
  %374 = vmatpush1.msra.mxu0 0.0
  %375 = vmatprep.subr.mxu0 0.0
  %376 = vmatpush1.msra.mxu0 0.0
  %377 = vmatprep.subr.mxu0 0.0
  %378 = vmatpush1.msra.mxu0 0.0
  %379 = vmatprep.subr.mxu0 0.0
  %380 = vmatpush1.msra.mxu0 0.0
  %381 = vmatprep.subr.mxu0 0.0
  %382 = vmatpush1.msra.mxu0 0.0
  %383 = vmatprep.subr.mxu0 0.0
  %384 = vmatpush1.msra.mxu0 0.0
  %385 = vmatprep.subr.mxu0 0.0
  %386 = vmatpush1.msra.mxu0 0.0
  %387 = vmatprep.subr.mxu0 0.0
  %388 = vmatpush1.msra.mxu0 0.0
  %389 = vmatprep.subr.mxu0 0.0
  %390 = vmatpush1.msra.mxu0 0.0
  %391 = vmatprep.subr.mxu0 0.0
  %392 = vmatpush1.msra.mxu0 0.0
  %393 = vmatprep.subr.mxu0 0.0
  %394 = vmatpush1.msra.mxu0 0.0
  %395 = vmatprep.subr.mxu0 0.0
  %396 = vmatpush1.msra.mxu0 0.0
  %397 = vmatprep.subr.mxu0 0.0
  %398 = vmatpush1.msra.mxu0 0.0
  %399 = vmatprep.subr.mxu0 0.0
  %400 = vmatpush1.msra.mxu0 0.0
  %401 = vmatprep.subr.mxu0 0.0
  %402 = vmatpush1.msra.mxu0 0.0
  %403 = vmatprep.subr.mxu0 0.0
  %404 = vmatpush1.msra.mxu0 0.0
  %405 = vmatprep.subr.mxu0 0.0
  %406 = vmatpush1.msra.mxu0 0.0
  %407 = vmatprep.subr.mxu0 0.0
  %408 = vmatpush1.msra.mxu0 0.0
  %409 = vmatprep.subr.mxu0 0.0
  %410 = vmatpush1.msra.mxu0 0.0
  %411 = vmatprep.subr.mxu0 0.0
  %412 = vmatpush1.msra.mxu0 0.0
  %413 = vmatprep.subr.mxu0 0.0
  %414 = vmatpush1.msra.mxu0 0.0
  %415 = vmatprep.subr.mxu0 0.0
  %416 = vmatpush1.msra.mxu0 0.0
  %417 = vmatprep.subr.mxu0 0.0
  %418 = vmatpush1.msra.mxu0 0.0
  %419 = vmatprep.subr.mxu0 0.0
  %420 = vmatpush1.msra.mxu0 0.0
  %421 = vmatprep.mubr.f32.mxu0 0.0
  %422 = vmatmul.mubr.f32.gmra.mrb[0].mxu0 %v142
  %v423 = vpop.f32.mrb[0].mxu0
  %v424 = vadd.f32 %v127, %v423
  %v425 = vpop.f32.mrb[0].mxu0
  %v426 = vadd.f32 %v131, %v425
  %427 = vdwg.mxu0
  %v428 = vmax.f32 %v211, %v353
  %v429 = vmax.f32 %v213, %v355
  %v430 = vmax.f32 %v282, %v424
  %v431 = vmax.f32 %v284, %v426
  %v432 = vpack.c.bf16 %v428, %v428
  %v433 = vpack.c.bf16 %v429, %v429
  %v434 = vpack.c.bf16 %v430, %v430
  %v435 = vpack.c.bf16 %v431, %v431
  %v436 = vld [vmem:[%s3] sm:$0xff]
  %v437 = vld [vmem:[%s3 + $0x8] sm:$0xff]
  %v438 = vld [vmem:[%s3 + $0x10] sm:$0xff]
  %v439 = vld [vmem:[%s3 + $0x18] sm:$0xff]
  %v440 = vld [vmem:[%s3 + $0x20] sm:$0xff]
  %v441 = vld [vmem:[%s3 + $0x28] sm:$0xff]
  %v442 = vld [vmem:[%s3 + $0x30] sm:$0xff]
  %v443 = vld [vmem:[%s3 + $0x38] sm:$0xff]
  %v444 = vld [vmem:[%s3 + $0x40] sm:$0xff]
  %v445 = vld [vmem:[%s3 + $0x48] sm:$0xff]
  %v446 = vld [vmem:[%s3 + $0x50] sm:$0xff]
  %v447 = vld [vmem:[%s3 + $0x58] sm:$0xff]
  %v448 = vld [vmem:[%s3 + $0x60] sm:$0xff]
  %v449 = vld [vmem:[%s3 + $0x68] sm:$0xff]
  %v450 = vld [vmem:[%s3 + $0x70] sm:$0xff]
  %v451 = vld [vmem:[%s3 + $0x78] sm:$0xff]
  %v452 = vld [vmem:[%s3 + $0x80] sm:$0xff]
  %v453 = vld [vmem:[%s3 + $0x88] sm:$0xff]
  %v454 = vld [vmem:[%s3 + $0x90] sm:$0xff]
  %v455 = vld [vmem:[%s3 + $0x98] sm:$0xff]
  %v456 = vld [vmem:[%s3 + $0xa0] sm:$0xff]
  %v457 = vld [vmem:[%s3 + $0xa8] sm:$0xff]
  %v458 = vld [vmem:[%s3 + $0xb0] sm:$0xff]
  %v459 = vld [vmem:[%s3 + $0xb8] sm:$0xff]
  %v460 = vld [vmem:[%s3 + $0xc0] sm:$0xff]
  %v461 = vld [vmem:[%s3 + $0xc8] sm:$0xff]
  %v462 = vld [vmem:[%s3 + $0xd0] sm:$0xff]
  %v463 = vld [vmem:[%s3 + $0xd8] sm:$0xff]
  %v464 = vld [vmem:[%s3 + $0xe0] sm:$0xff]
  %v465 = vld [vmem:[%s3 + $0xe8] sm:$0xff]
  %v466 = vld [vmem:[%s3 + $0xf0] sm:$0xff]
  %v467 = vld [vmem:[%s3 + $0xf8] sm:$0xff]
  %v468 = vld [vmem:[%s3 + $0x100] sm:$0xff]
  %v469 = vld [vmem:[%s3 + $0x108] sm:$0xff]
  %v470 = vld [vmem:[%s3 + $0x110] sm:$0xff]
  %v471 = vld [vmem:[%s3 + $0x118] sm:$0xff]
  %v472 = vld [vmem:[%s3 + $0x120] sm:$0xff]
  %v473 = vld [vmem:[%s3 + $0x128] sm:$0xff]
  %v474 = vld [vmem:[%s3 + $0x130] sm:$0xff]
  %v475 = vld [vmem:[%s3 + $0x138] sm:$0xff]
  %v476 = vld [vmem:[%s3 + $0x140] sm:$0xff]
  %v477 = vld [vmem:[%s3 + $0x148] sm:$0xff]
  %v478 = vld [vmem:[%s3 + $0x150] sm:$0xff]
  %v479 = vld [vmem:[%s3 + $0x158] sm:$0xff]
  %v480 = vld [vmem:[%s3 + $0x160] sm:$0xff]
  %v481 = vld [vmem:[%s3 + $0x168] sm:$0xff]
  %v482 = vld [vmem:[%s3 + $0x170] sm:$0xff]
  %v483 = vld [vmem:[%s3 + $0x178] sm:$0xff]
  %v484 = vld [vmem:[%s3 + $0x180] sm:$0xff]
  %v485 = vld [vmem:[%s3 + $0x188] sm:$0xff]
  %v486 = vld [vmem:[%s3 + $0x190] sm:$0xff]
  %v487 = vld [vmem:[%s3 + $0x198] sm:$0xff]
  %v488 = vld [vmem:[%s3 + $0x1a0] sm:$0xff]
  %v489 = vld [vmem:[%s3 + $0x1a8] sm:$0xff]
  %v490 = vld [vmem:[%s3 + $0x1b0] sm:$0xff]
  %v491 = vld [vmem:[%s3 + $0x1b8] sm:$0xff]
  %v492 = vld [vmem:[%s3 + $0x1c0] sm:$0xff]
  %v493 = vld [vmem:[%s3 + $0x1c8] sm:$0xff]
  %v494 = vld [vmem:[%s3 + $0x1d0] sm:$0xff]
  %v495 = vld [vmem:[%s3 + $0x1d8] sm:$0xff]
  %v496 = vld [vmem:[%s3 + $0x1e0] sm:$0xff]
  %v497 = vld [vmem:[%s3 + $0x1e8] sm:$0xff]
  %v498 = vld [vmem:[%s3 + $0x1f0] sm:$0xff]
  %v499 = vld [vmem:[%s3 + $0x1f8] sm:$0xff]
  %v500 = vld [vmem:[%s3 + $0x200] sm:$0xff]
  %v501 = vld [vmem:[%s3 + $0x208] sm:$0xff]
  %v502 = vld [vmem:[%s3 + $0x210] sm:$0xff]
  %v503 = vld [vmem:[%s3 + $0x218] sm:$0xff]
  %v504 = vld [vmem:[%s3 + $0x220] sm:$0xff]
  %v505 = vld [vmem:[%s3 + $0x228] sm:$0xff]
  %v506 = vld [vmem:[%s3 + $0x230] sm:$0xff]
  %v507 = vld [vmem:[%s3 + $0x238] sm:$0xff]
  %v508 = vld [vmem:[%s3 + $0x240] sm:$0xff]
  %v509 = vld [vmem:[%s3 + $0x248] sm:$0xff]
  %v510 = vld [vmem:[%s3 + $0x250] sm:$0xff]
  %v511 = vld [vmem:[%s3 + $0x258] sm:$0xff]
  %v512 = vld [vmem:[%s3 + $0x260] sm:$0xff]
  %v513 = vld [vmem:[%s3 + $0x268] sm:$0xff]
  %v514 = vld [vmem:[%s3 + $0x270] sm:$0xff]
  %v515 = vld [vmem:[%s3 + $0x278] sm:$0xff]
  %v516 = vld [vmem:[%s3 + $0x280] sm:$0xff]
  %v517 = vld [vmem:[%s3 + $0x288] sm:$0xff]
  %v518 = vld [vmem:[%s3 + $0x290] sm:$0xff]
  %v519 = vld [vmem:[%s3 + $0x298] sm:$0xff]
  %v520 = vld [vmem:[%s3 + $0x2a0] sm:$0xff]
  %v521 = vld [vmem:[%s3 + $0x2a8] sm:$0xff]
  %v522 = vld [vmem:[%s3 + $0x2b0] sm:$0xff]
  %v523 = vld [vmem:[%s3 + $0x2b8] sm:$0xff]
  %v524 = vld [vmem:[%s3 + $0x2c0] sm:$0xff]
  %v525 = vld [vmem:[%s3 + $0x2c8] sm:$0xff]
  %v526 = vld [vmem:[%s3 + $0x2d0] sm:$0xff]
  %v527 = vld [vmem:[%s3 + $0x2d8] sm:$0xff]
  %v528 = vld [vmem:[%s3 + $0x2e0] sm:$0xff]
  %v529 = vld [vmem:[%s3 + $0x2e8] sm:$0xff]
  %v530 = vld [vmem:[%s3 + $0x2f0] sm:$0xff]
  %v531 = vld [vmem:[%s3 + $0x2f8] sm:$0xff]
  %v532 = vld [vmem:[%s3 + $0x300] sm:$0xff]
  %v533 = vld [vmem:[%s3 + $0x308] sm:$0xff]
  %v534 = vld [vmem:[%s3 + $0x310] sm:$0xff]
  %v535 = vld [vmem:[%s3 + $0x318] sm:$0xff]
  %v536 = vld [vmem:[%s3 + $0x320] sm:$0xff]
  %v537 = vld [vmem:[%s3 + $0x328] sm:$0xff]
  %v538 = vld [vmem:[%s3 + $0x330] sm:$0xff]
  %v539 = vld [vmem:[%s3 + $0x338] sm:$0xff]
  %v540 = vld [vmem:[%s3 + $0x340] sm:$0xff]
  %v541 = vld [vmem:[%s3 + $0x348] sm:$0xff]
  %v542 = vld [vmem:[%s3 + $0x350] sm:$0xff]
  %v543 = vld [vmem:[%s3 + $0x358] sm:$0xff]
  %v544 = vld [vmem:[%s3 + $0x360] sm:$0xff]
  %v545 = vld [vmem:[%s3 + $0x368] sm:$0xff]
  %v546 = vld [vmem:[%s3 + $0x370] sm:$0xff]
  %v547 = vld [vmem:[%s3 + $0x378] sm:$0xff]
  %v548 = vld [vmem:[%s3 + $0x380] sm:$0xff]
  %v549 = vld [vmem:[%s3 + $0x388] sm:$0xff]
  %v550 = vld [vmem:[%s3 + $0x390] sm:$0xff]
  %v551 = vld [vmem:[%s3 + $0x398] sm:$0xff]
  %v552 = vld [vmem:[%s3 + $0x3a0] sm:$0xff]
  %v553 = vld [vmem:[%s3 + $0x3a8] sm:$0xff]
  %v554 = vld [vmem:[%s3 + $0x3b0] sm:$0xff]
  %v555 = vld [vmem:[%s3 + $0x3b8] sm:$0xff]
  %v556 = vld [vmem:[%s3 + $0x3c0] sm:$0xff]
  %v557 = vld [vmem:[%s3 + $0x3c8] sm:$0xff]
  %v558 = vld [vmem:[%s3 + $0x3d0] sm:$0xff]
  %v559 = vld [vmem:[%s3 + $0x3d8] sm:$0xff]
  %v560 = vld [vmem:[%s3 + $0x3e0] sm:$0xff]
  %v561 = vld [vmem:[%s3 + $0x3e8] sm:$0xff]
  %v562 = vld [vmem:[%s3 + $0x3f0] sm:$0xff]
  %v563 = vld [vmem:[%s3 + $0x3f8] sm:$0xff]
  %v564 = vld [vmem:[%s4] sm:$0xf]
  %v566 = vlaneseq
  %v567 = vshrl.u32 %v566, 7
  %v568 = vsub.s32 0, %v567
  %v569 = vrot.slane %v564, %v568
  %v570 = vlaneseq
  %v571 = vshrl.u32 %v570, 7
  %v572 = vsub.s32 1, %v571
  %v573 = vrot.slane %v564, %v572
  %v574 = vlaneseq
  %v575 = vshrl.u32 %v574, 7
  %v576 = vsub.s32 2, %v575
  %v577 = vrot.slane %v564, %v576
  %v578 = vlaneseq
  %v579 = vshrl.u32 %v578, 7
  %v580 = vsub.s32 3, %v579
  %v581 = vrot.slane %v564, %v580
  %v714 = vunpack.c.l.b16 %v436
  %v715 = vunpack.c.h.b16 %v436
  %v716 = vunpack.c.l.b16 %v437
  %v717 = vunpack.c.h.b16 %v437
  %v718 = vunpack.c.l.b16 %v438
  %v719 = vunpack.c.h.b16 %v438
  %v720 = vunpack.c.l.b16 %v439
  %v721 = vunpack.c.h.b16 %v439
  %v722 = vunpack.c.l.b16 %v440
  %v723 = vunpack.c.h.b16 %v440
  %v724 = vunpack.c.l.b16 %v441
  %v725 = vunpack.c.h.b16 %v441
  %v726 = vunpack.c.l.b16 %v442
  %v727 = vunpack.c.h.b16 %v442
  %v728 = vunpack.c.l.b16 %v443
  %v729 = vunpack.c.h.b16 %v443
  %v730 = vunpack.c.l.b16 %v444
  %v731 = vunpack.c.h.b16 %v444
  %v732 = vunpack.c.l.b16 %v445
  %v733 = vunpack.c.h.b16 %v445
  %v734 = vunpack.c.l.b16 %v446
  %v735 = vunpack.c.h.b16 %v446
  %v736 = vunpack.c.l.b16 %v447
  %v737 = vunpack.c.h.b16 %v447
  %v738 = vunpack.c.l.b16 %v448
  %v739 = vunpack.c.h.b16 %v448
  %v740 = vunpack.c.l.b16 %v449
  %v741 = vunpack.c.h.b16 %v449
  %v742 = vunpack.c.l.b16 %v450
  %v743 = vunpack.c.h.b16 %v450
  %v744 = vunpack.c.l.b16 %v451
  %v745 = vunpack.c.h.b16 %v451
  %v746 = vunpack.c.l.b16 %v452
  %v747 = vunpack.c.h.b16 %v452
  %v748 = vunpack.c.l.b16 %v453
  %v749 = vunpack.c.h.b16 %v453
  %v750 = vunpack.c.l.b16 %v454
  %v751 = vunpack.c.h.b16 %v454
  %v752 = vunpack.c.l.b16 %v455
  %v753 = vunpack.c.h.b16 %v455
  %v754 = vunpack.c.l.b16 %v456
  %v755 = vunpack.c.h.b16 %v456
  %v756 = vunpack.c.l.b16 %v457
  %v757 = vunpack.c.h.b16 %v457
  %v758 = vunpack.c.l.b16 %v458
  %v759 = vunpack.c.h.b16 %v458
  %v760 = vunpack.c.l.b16 %v459
  %v761 = vunpack.c.h.b16 %v459
  %v762 = vunpack.c.l.b16 %v460
  %v763 = vunpack.c.h.b16 %v460
  %v764 = vunpack.c.l.b16 %v461
  %v765 = vunpack.c.h.b16 %v461
  %v766 = vunpack.c.l.b16 %v462
  %v767 = vunpack.c.h.b16 %v462
  %v768 = vunpack.c.l.b16 %v463
  %v769 = vunpack.c.h.b16 %v463
  %v770 = vunpack.c.l.b16 %v464
  %v771 = vunpack.c.h.b16 %v464
  %v772 = vunpack.c.l.b16 %v465
  %v773 = vunpack.c.h.b16 %v465
  %v774 = vunpack.c.l.b16 %v466
  %v775 = vunpack.c.h.b16 %v466
  %v776 = vunpack.c.l.b16 %v467
  %v777 = vunpack.c.h.b16 %v467
  %v778 = vunpack.c.l.b16 %v468
  %v779 = vunpack.c.h.b16 %v468
  %v780 = vunpack.c.l.b16 %v469
  %v781 = vunpack.c.h.b16 %v469
  %v782 = vunpack.c.l.b16 %v470
  %v783 = vunpack.c.h.b16 %v470
  %v784 = vunpack.c.l.b16 %v471
  %v785 = vunpack.c.h.b16 %v471
  %v786 = vunpack.c.l.b16 %v472
  %v787 = vunpack.c.h.b16 %v472
  %v788 = vunpack.c.l.b16 %v473
  %v789 = vunpack.c.h.b16 %v473
  %v790 = vunpack.c.l.b16 %v474
  %v791 = vunpack.c.h.b16 %v474
  %v792 = vunpack.c.l.b16 %v475
  %v793 = vunpack.c.h.b16 %v475
  %v794 = vunpack.c.l.b16 %v476
  %v795 = vunpack.c.h.b16 %v476
  %v796 = vunpack.c.l.b16 %v477
  %v797 = vunpack.c.h.b16 %v477
  %v798 = vunpack.c.l.b16 %v478
  %v799 = vunpack.c.h.b16 %v478
  %v800 = vunpack.c.l.b16 %v479
  %v801 = vunpack.c.h.b16 %v479
  %v802 = vunpack.c.l.b16 %v480
  %v803 = vunpack.c.h.b16 %v480
  %v804 = vunpack.c.l.b16 %v481
  %v805 = vunpack.c.h.b16 %v481
  %v806 = vunpack.c.l.b16 %v482
  %v807 = vunpack.c.h.b16 %v482
  %v808 = vunpack.c.l.b16 %v483
  %v809 = vunpack.c.h.b16 %v483
  %v810 = vunpack.c.l.b16 %v484
  %v811 = vunpack.c.h.b16 %v484
  %v812 = vunpack.c.l.b16 %v485
  %v813 = vunpack.c.h.b16 %v485
  %v814 = vunpack.c.l.b16 %v486
  %v815 = vunpack.c.h.b16 %v486
  %v816 = vunpack.c.l.b16 %v487
  %v817 = vunpack.c.h.b16 %v487
  %v818 = vunpack.c.l.b16 %v488
  %v819 = vunpack.c.h.b16 %v488
  %v820 = vunpack.c.l.b16 %v489
  %v821 = vunpack.c.h.b16 %v489
  %v822 = vunpack.c.l.b16 %v490
  %v823 = vunpack.c.h.b16 %v490
  %v824 = vunpack.c.l.b16 %v491
  %v825 = vunpack.c.h.b16 %v491
  %v826 = vunpack.c.l.b16 %v492
  %v827 = vunpack.c.h.b16 %v492
  %v828 = vunpack.c.l.b16 %v493
  %v829 = vunpack.c.h.b16 %v493
  %v830 = vunpack.c.l.b16 %v494
  %v831 = vunpack.c.h.b16 %v494
  %v832 = vunpack.c.l.b16 %v495
  %v833 = vunpack.c.h.b16 %v495
  %v834 = vunpack.c.l.b16 %v496
  %v835 = vunpack.c.h.b16 %v496
  %v836 = vunpack.c.l.b16 %v497
  %v837 = vunpack.c.h.b16 %v497
  %v838 = vunpack.c.l.b16 %v498
  %v839 = vunpack.c.h.b16 %v498
  %v840 = vunpack.c.l.b16 %v499
  %v841 = vunpack.c.h.b16 %v499
  %v842 = vunpack.c.l.b16 %v500
  %v843 = vunpack.c.h.b16 %v500
  %v844 = vunpack.c.l.b16 %v501
  %v845 = vunpack.c.h.b16 %v501
  %v846 = vunpack.c.l.b16 %v502
  %v847 = vunpack.c.h.b16 %v502
  %v848 = vunpack.c.l.b16 %v503
  %v849 = vunpack.c.h.b16 %v503
  %v850 = vunpack.c.l.b16 %v504
  %v851 = vunpack.c.h.b16 %v504
  %v852 = vunpack.c.l.b16 %v505
  %v853 = vunpack.c.h.b16 %v505
  %v854 = vunpack.c.l.b16 %v506
  %v855 = vunpack.c.h.b16 %v506
  %v856 = vunpack.c.l.b16 %v507
  %v857 = vunpack.c.h.b16 %v507
  %v858 = vunpack.c.l.b16 %v508
  %v859 = vunpack.c.h.b16 %v508
  %v860 = vunpack.c.l.b16 %v509
  %v861 = vunpack.c.h.b16 %v509
  %v862 = vunpack.c.l.b16 %v510
  %v863 = vunpack.c.h.b16 %v510
  %v864 = vunpack.c.l.b16 %v511
  %v865 = vunpack.c.h.b16 %v511
  %v866 = vunpack.c.l.b16 %v512
  %v867 = vunpack.c.h.b16 %v512
  %v868 = vunpack.c.l.b16 %v513
  %v869 = vunpack.c.h.b16 %v513
  %v870 = vunpack.c.l.b16 %v514
  %v871 = vunpack.c.h.b16 %v514
  %v872 = vunpack.c.l.b16 %v515
  %v873 = vunpack.c.h.b16 %v515
  %v874 = vunpack.c.l.b16 %v516
  %v875 = vunpack.c.h.b16 %v516
  %v876 = vunpack.c.l.b16 %v517
  %v877 = vunpack.c.h.b16 %v517
  %v878 = vunpack.c.l.b16 %v518
  %v879 = vunpack.c.h.b16 %v518
  %v880 = vunpack.c.l.b16 %v519
  %v881 = vunpack.c.h.b16 %v519
  %v882 = vunpack.c.l.b16 %v520
  %v883 = vunpack.c.h.b16 %v520
  %v884 = vunpack.c.l.b16 %v521
  %v885 = vunpack.c.h.b16 %v521
  %v886 = vunpack.c.l.b16 %v522
  %v887 = vunpack.c.h.b16 %v522
  %v888 = vunpack.c.l.b16 %v523
  %v889 = vunpack.c.h.b16 %v523
  %v890 = vunpack.c.l.b16 %v524
  %v891 = vunpack.c.h.b16 %v524
  %v892 = vunpack.c.l.b16 %v525
  %v893 = vunpack.c.h.b16 %v525
  %v894 = vunpack.c.l.b16 %v526
  %v895 = vunpack.c.h.b16 %v526
  %v896 = vunpack.c.l.b16 %v527
  %v897 = vunpack.c.h.b16 %v527
  %v898 = vunpack.c.l.b16 %v528
  %v899 = vunpack.c.h.b16 %v528
  %v900 = vunpack.c.l.b16 %v529
  %v901 = vunpack.c.h.b16 %v529
  %v902 = vunpack.c.l.b16 %v530
  %v903 = vunpack.c.h.b16 %v530
  %v904 = vunpack.c.l.b16 %v531
  %v905 = vunpack.c.h.b16 %v531
  %v906 = vunpack.c.l.b16 %v532
  %v907 = vunpack.c.h.b16 %v532
  %v908 = vunpack.c.l.b16 %v533
  %v909 = vunpack.c.h.b16 %v533
  %v910 = vunpack.c.l.b16 %v534
  %v911 = vunpack.c.h.b16 %v534
  %v912 = vunpack.c.l.b16 %v535
  %v913 = vunpack.c.h.b16 %v535
  %v914 = vunpack.c.l.b16 %v536
  %v915 = vunpack.c.h.b16 %v536
  %v916 = vunpack.c.l.b16 %v537
  %v917 = vunpack.c.h.b16 %v537
  %v918 = vunpack.c.l.b16 %v538
  %v919 = vunpack.c.h.b16 %v538
  %v920 = vunpack.c.l.b16 %v539
  %v921 = vunpack.c.h.b16 %v539
  %v922 = vunpack.c.l.b16 %v540
  %v923 = vunpack.c.h.b16 %v540
  %v924 = vunpack.c.l.b16 %v541
  %v925 = vunpack.c.h.b16 %v541
  %v926 = vunpack.c.l.b16 %v542
  %v927 = vunpack.c.h.b16 %v542
  %v928 = vunpack.c.l.b16 %v543
  %v929 = vunpack.c.h.b16 %v543
  %v930 = vunpack.c.l.b16 %v544
  %v931 = vunpack.c.h.b16 %v544
  %v932 = vunpack.c.l.b16 %v545
  %v933 = vunpack.c.h.b16 %v545
  %v934 = vunpack.c.l.b16 %v546
  %v935 = vunpack.c.h.b16 %v546
  %v936 = vunpack.c.l.b16 %v547
  %v937 = vunpack.c.h.b16 %v547
  %v938 = vunpack.c.l.b16 %v548
  %v939 = vunpack.c.h.b16 %v548
  %v940 = vunpack.c.l.b16 %v549
  %v941 = vunpack.c.h.b16 %v549
  %v942 = vunpack.c.l.b16 %v550
  %v943 = vunpack.c.h.b16 %v550
  %v944 = vunpack.c.l.b16 %v551
  %v945 = vunpack.c.h.b16 %v551
  %v946 = vunpack.c.l.b16 %v552
  %v947 = vunpack.c.h.b16 %v552
  %v948 = vunpack.c.l.b16 %v553
  %v949 = vunpack.c.h.b16 %v553
  %v950 = vunpack.c.l.b16 %v554
  %v951 = vunpack.c.h.b16 %v554
  %v952 = vunpack.c.l.b16 %v555
  %v953 = vunpack.c.h.b16 %v555
  %v954 = vunpack.c.l.b16 %v556
  %v955 = vunpack.c.h.b16 %v556
  %v956 = vunpack.c.l.b16 %v557
  %v957 = vunpack.c.h.b16 %v557
  %v958 = vunpack.c.l.b16 %v558
  %v959 = vunpack.c.h.b16 %v558
  %v960 = vunpack.c.l.b16 %v559
  %v961 = vunpack.c.h.b16 %v559
  %v962 = vunpack.c.l.b16 %v560
  %v963 = vunpack.c.h.b16 %v560
  %v964 = vunpack.c.l.b16 %v561
  %v965 = vunpack.c.h.b16 %v561
  %v966 = vunpack.c.l.b16 %v562
  %v967 = vunpack.c.h.b16 %v562
  %v968 = vunpack.c.l.b16 %v563
  %v969 = vunpack.c.h.b16 %v563
  %v970 = vpack.c.b16 %v718, %v714
  %v971 = vpack.c.b16 %v719, %v715
  %v972 = vpack.c.b16 %v720, %v716
  %v973 = vpack.c.b16 %v721, %v717
  %v974 = vpack.c.b16 %v726, %v722
  %v975 = vpack.c.b16 %v727, %v723
  %v976 = vpack.c.b16 %v728, %v724
  %v977 = vpack.c.b16 %v729, %v725
  %v978 = vpack.c.b16 %v734, %v730
  %v979 = vpack.c.b16 %v735, %v731
  %v980 = vpack.c.b16 %v736, %v732
  %v981 = vpack.c.b16 %v737, %v733
  %v982 = vpack.c.b16 %v742, %v738
  %v983 = vpack.c.b16 %v743, %v739
  %v984 = vpack.c.b16 %v744, %v740
  %v985 = vpack.c.b16 %v745, %v741
  %v986 = vpack.c.b16 %v750, %v746
  %v987 = vpack.c.b16 %v751, %v747
  %v988 = vpack.c.b16 %v752, %v748
  %v989 = vpack.c.b16 %v753, %v749
  %v990 = vpack.c.b16 %v758, %v754
  %v991 = vpack.c.b16 %v759, %v755
  %v992 = vpack.c.b16 %v760, %v756
  %v993 = vpack.c.b16 %v761, %v757
  %v994 = vpack.c.b16 %v766, %v762
  %v995 = vpack.c.b16 %v767, %v763
  %v996 = vpack.c.b16 %v768, %v764
  %v997 = vpack.c.b16 %v769, %v765
  %v998 = vpack.c.b16 %v774, %v770
  %v999 = vpack.c.b16 %v775, %v771
  %v1000 = vpack.c.b16 %v776, %v772
  %v1001 = vpack.c.b16 %v777, %v773
  %v1002 = vpack.c.b16 %v782, %v778
  %v1003 = vpack.c.b16 %v783, %v779
  %v1004 = vpack.c.b16 %v784, %v780
  %v1005 = vpack.c.b16 %v785, %v781
  %v1006 = vpack.c.b16 %v790, %v786
  %v1007 = vpack.c.b16 %v791, %v787
  %v1008 = vpack.c.b16 %v792, %v788
  %v1009 = vpack.c.b16 %v793, %v789
  %v1010 = vpack.c.b16 %v798, %v794
  %v1011 = vpack.c.b16 %v799, %v795
  %v1012 = vpack.c.b16 %v800, %v796
  %v1013 = vpack.c.b16 %v801, %v797
  %v1014 = vpack.c.b16 %v806, %v802
  %v1015 = vpack.c.b16 %v807, %v803
  %v1016 = vpack.c.b16 %v808, %v804
  %v1017 = vpack.c.b16 %v809, %v805
  %v1018 = vpack.c.b16 %v814, %v810
  %v1019 = vpack.c.b16 %v815, %v811
  %v1020 = vpack.c.b16 %v816, %v812
  %v1021 = vpack.c.b16 %v817, %v813
  %v1022 = vpack.c.b16 %v822, %v818
  %v1023 = vpack.c.b16 %v823, %v819
  %v1024 = vpack.c.b16 %v824, %v820
  %v1025 = vpack.c.b16 %v825, %v821
  %v1026 = vpack.c.b16 %v830, %v826
  %v1027 = vpack.c.b16 %v831, %v827
  %v1028 = vpack.c.b16 %v832, %v828
  %v1029 = vpack.c.b16 %v833, %v829
  %v1030 = vpack.c.b16 %v838, %v834
  %v1031 = vpack.c.b16 %v839, %v835
  %v1032 = vpack.c.b16 %v840, %v836
  %v1033 = vpack.c.b16 %v841, %v837
  %v1034 = vpack.c.b16 %v846, %v842
  %v1035 = vpack.c.b16 %v847, %v843
  %v1036 = vpack.c.b16 %v848, %v844
  %v1037 = vpack.c.b16 %v849, %v845
  %v1038 = vpack.c.b16 %v854, %v850
  %v1039 = vpack.c.b16 %v855, %v851
  %v1040 = vpack.c.b16 %v856, %v852
  %v1041 = vpack.c.b16 %v857, %v853
  %v1042 = vpack.c.b16 %v862, %v858
  %v1043 = vpack.c.b16 %v863, %v859
  %v1044 = vpack.c.b16 %v864, %v860
  %v1045 = vpack.c.b16 %v865, %v861
  %v1046 = vpack.c.b16 %v870, %v866
  %v1047 = vpack.c.b16 %v871, %v867
  %v1048 = vpack.c.b16 %v872, %v868
  %v1049 = vpack.c.b16 %v873, %v869
  %v1050 = vpack.c.b16 %v878, %v874
  %v1051 = vpack.c.b16 %v879, %v875
  %v1052 = vpack.c.b16 %v880, %v876
  %v1053 = vpack.c.b16 %v881, %v877
  %v1054 = vpack.c.b16 %v886, %v882
  %v1055 = vpack.c.b16 %v887, %v883
  %v1056 = vpack.c.b16 %v888, %v884
  %v1057 = vpack.c.b16 %v889, %v885
  %v1058 = vpack.c.b16 %v894, %v890
  %v1059 = vpack.c.b16 %v895, %v891
  %v1060 = vpack.c.b16 %v896, %v892
  %v1061 = vpack.c.b16 %v897, %v893
  %v1062 = vpack.c.b16 %v902, %v898
  %v1063 = vpack.c.b16 %v903, %v899
  %v1064 = vpack.c.b16 %v904, %v900
  %v1065 = vpack.c.b16 %v905, %v901
  %v1066 = vpack.c.b16 %v910, %v906
  %v1067 = vpack.c.b16 %v911, %v907
  %v1068 = vpack.c.b16 %v912, %v908
  %v1069 = vpack.c.b16 %v913, %v909
  %v1070 = vpack.c.b16 %v918, %v914
  %v1071 = vpack.c.b16 %v919, %v915
  %v1072 = vpack.c.b16 %v920, %v916
  %v1073 = vpack.c.b16 %v921, %v917
  %v1074 = vpack.c.b16 %v926, %v922
  %v1075 = vpack.c.b16 %v927, %v923
  %v1076 = vpack.c.b16 %v928, %v924
  %v1077 = vpack.c.b16 %v929, %v925
  %v1078 = vpack.c.b16 %v934, %v930
  %v1079 = vpack.c.b16 %v935, %v931
  %v1080 = vpack.c.b16 %v936, %v932
  %v1081 = vpack.c.b16 %v937, %v933
  %v1082 = vpack.c.b16 %v942, %v938
  %v1083 = vpack.c.b16 %v943, %v939
  %v1084 = vpack.c.b16 %v944, %v940
  %v1085 = vpack.c.b16 %v945, %v941
  %v1086 = vpack.c.b16 %v950, %v946
  %v1087 = vpack.c.b16 %v951, %v947
  %v1088 = vpack.c.b16 %v952, %v948
  %v1089 = vpack.c.b16 %v953, %v949
  %v1090 = vpack.c.b16 %v958, %v954
  %v1091 = vpack.c.b16 %v959, %v955
  %v1092 = vpack.c.b16 %v960, %v956
  %v1093 = vpack.c.b16 %v961, %v957
  %v1094 = vpack.c.b16 %v966, %v962
  %v1095 = vpack.c.b16 %v967, %v963
  %v1096 = vpack.c.b16 %v968, %v964
  %v1097 = vpack.c.b16 %v969, %v965
  %1226 = vmatprep.subr.bf16.mxu0 %v971
  %1227 = vmatpush1.bf16.msra.mxu0 %v970
  %1228 = vmatprep.subr.bf16.mxu0 %v975
  %1229 = vmatpush1.bf16.msra.mxu0 %v974
  %1230 = vmatprep.subr.bf16.mxu0 %v979
  %1231 = vmatpush1.bf16.msra.mxu0 %v978
  %1232 = vmatprep.subr.bf16.mxu0 %v983
  %1233 = vmatpush1.bf16.msra.mxu0 %v982
  %1234 = vmatprep.subr.bf16.mxu0 %v987
  %1235 = vmatpush1.bf16.msra.mxu0 %v986
  %1236 = vmatprep.subr.bf16.mxu0 %v991
  %1237 = vmatpush1.bf16.msra.mxu0 %v990
  %1238 = vmatprep.subr.bf16.mxu0 %v995
  %1239 = vmatpush1.bf16.msra.mxu0 %v994
  %1240 = vmatprep.subr.bf16.mxu0 %v999
  %1241 = vmatpush1.bf16.msra.mxu0 %v998
  %1242 = vmatprep.subr.bf16.mxu0 %v1003
  %1243 = vmatpush1.bf16.msra.mxu0 %v1002
  %1244 = vmatprep.subr.bf16.mxu0 %v1007
  %1245 = vmatpush1.bf16.msra.mxu0 %v1006
  %1246 = vmatprep.subr.bf16.mxu0 %v1011
  %1247 = vmatpush1.bf16.msra.mxu0 %v1010
  %1248 = vmatprep.subr.bf16.mxu0 %v1015
  %1249 = vmatpush1.bf16.msra.mxu0 %v1014
  %1250 = vmatprep.subr.bf16.mxu0 %v1019
  %1251 = vmatpush1.bf16.msra.mxu0 %v1018
  %1252 = vmatprep.subr.bf16.mxu0 %v1023
  %1253 = vmatpush1.bf16.msra.mxu0 %v1022
  %1254 = vmatprep.subr.bf16.mxu0 %v1027
  %1255 = vmatpush1.bf16.msra.mxu0 %v1026
  %1256 = vmatprep.subr.bf16.mxu0 %v1031
  %1257 = vmatpush1.bf16.msra.mxu0 %v1030
  %1258 = vmatprep.mubr.bf16.mxu0 %v433
  %1259 = vmatmul.mubr.bf16.gmra.mrb[0].mxu0 %v432
  %v1260 = vpop.f32.mrb[0].mxu0
  %v1261 = vadd.f32 %v569, %v1260
  %v1262 = vpop.f32.mrb[0].mxu0
  %v1263 = vadd.f32 %v573, %v1262
  %v1264 = vpop.f32.mrb[0].mxu0
  %v1265 = vpop.f32.mrb[0].mxu0
  %1266 = vdwg.mxu0
  %1267 = vmatprep.subr.bf16.mxu0 %v1035
  %1268 = vmatpush1.bf16.msra.mxu0 %v1034
  %1269 = vmatprep.subr.bf16.mxu0 %v1039
  %1270 = vmatpush1.bf16.msra.mxu0 %v1038
  %1271 = vmatprep.subr.bf16.mxu0 %v1043
  %1272 = vmatpush1.bf16.msra.mxu0 %v1042
  %1273 = vmatprep.subr.bf16.mxu0 %v1047
  %1274 = vmatpush1.bf16.msra.mxu0 %v1046
  %1275 = vmatprep.subr.bf16.mxu0 %v1051
  %1276 = vmatpush1.bf16.msra.mxu0 %v1050
  %1277 = vmatprep.subr.bf16.mxu0 %v1055
  %1278 = vmatpush1.bf16.msra.mxu0 %v1054
  %1279 = vmatprep.subr.bf16.mxu0 %v1059
  %1280 = vmatpush1.bf16.msra.mxu0 %v1058
  %1281 = vmatprep.subr.bf16.mxu0 %v1063
  %1282 = vmatpush1.bf16.msra.mxu0 %v1062
  %1283 = vmatprep.subr.bf16.mxu0 %v1067
  %1284 = vmatpush1.bf16.msra.mxu0 %v1066
  %1285 = vmatprep.subr.bf16.mxu0 %v1071
  %1286 = vmatpush1.bf16.msra.mxu0 %v1070
  %1287 = vmatprep.subr.bf16.mxu0 %v1075
  %1288 = vmatpush1.bf16.msra.mxu0 %v1074
  %1289 = vmatprep.subr.bf16.mxu0 %v1079
  %1290 = vmatpush1.bf16.msra.mxu0 %v1078
  %1291 = vmatprep.subr.bf16.mxu0 %v1083
  %1292 = vmatpush1.bf16.msra.mxu0 %v1082
  %1293 = vmatprep.subr.bf16.mxu0 %v1087
  %1294 = vmatpush1.bf16.msra.mxu0 %v1086
  %1295 = vmatprep.subr.bf16.mxu0 %v1091
  %1296 = vmatpush1.bf16.msra.mxu0 %v1090
  %1297 = vmatprep.subr.bf16.mxu0 %v1095
  %1298 = vmatpush1.bf16.msra.mxu0 %v1094
  %1299 = vmatprep.mubr.bf16.mxu0 %v435
  %1300 = vmatmul.mubr.bf16.gmra.mrb[0].mxu0 %v434
  %v1301 = vpop.f32.mrb[0].mxu0
  %v1302 = vadd.f32 %v1261, %v1301
  %v1303 = vpop.f32.mrb[0].mxu0
  %v1304 = vadd.f32 %v1263, %v1303
  %v1305 = vpop.f32.mrb[0].mxu0
  %v1306 = vpop.f32.mrb[0].mxu0
  %1307 = vdwg.mxu0
  %1308 = vmatprep.subr.bf16.mxu0 %v973
  %1309 = vmatpush1.bf16.msra.mxu0 %v972
  %1310 = vmatprep.subr.bf16.mxu0 %v977
  %1311 = vmatpush1.bf16.msra.mxu0 %v976
  %1312 = vmatprep.subr.bf16.mxu0 %v981
  %1313 = vmatpush1.bf16.msra.mxu0 %v980
  %1314 = vmatprep.subr.bf16.mxu0 %v985
  %1315 = vmatpush1.bf16.msra.mxu0 %v984
  %1316 = vmatprep.subr.bf16.mxu0 %v989
  %1317 = vmatpush1.bf16.msra.mxu0 %v988
  %1318 = vmatprep.subr.bf16.mxu0 %v993
  %1319 = vmatpush1.bf16.msra.mxu0 %v992
  %1320 = vmatprep.subr.bf16.mxu0 %v997
  %1321 = vmatpush1.bf16.msra.mxu0 %v996
  %1322 = vmatprep.subr.bf16.mxu0 %v1001
  %1323 = vmatpush1.bf16.msra.mxu0 %v1000
  %1324 = vmatprep.subr.bf16.mxu0 %v1005
  %1325 = vmatpush1.bf16.msra.mxu0 %v1004
  %1326 = vmatprep.subr.bf16.mxu0 %v1009
  %1327 = vmatpush1.bf16.msra.mxu0 %v1008
  %1328 = vmatprep.subr.bf16.mxu0 %v1013
  %1329 = vmatpush1.bf16.msra.mxu0 %v1012
  %1330 = vmatprep.subr.bf16.mxu0 %v1017
  %1331 = vmatpush1.bf16.msra.mxu0 %v1016
  %1332 = vmatprep.subr.bf16.mxu0 %v1021
  %1333 = vmatpush1.bf16.msra.mxu0 %v1020
  %1334 = vmatprep.subr.bf16.mxu0 %v1025
  %1335 = vmatpush1.bf16.msra.mxu0 %v1024
  %1336 = vmatprep.subr.bf16.mxu0 %v1029
  %1337 = vmatpush1.bf16.msra.mxu0 %v1028
  %1338 = vmatprep.subr.bf16.mxu0 %v1033
  %1339 = vmatpush1.bf16.msra.mxu0 %v1032
  %1340 = vmatprep.mubr.bf16.mxu0 %v433
  %1341 = vmatmul.mubr.bf16.gmra.mrb[0].mxu0 %v432
  %v1342 = vpop.f32.mrb[0].mxu0
  %v1343 = vadd.f32 %v577, %v1342
  %v1344 = vpop.f32.mrb[0].mxu0
  %v1345 = vadd.f32 %v581, %v1344
  %v1346 = vpop.f32.mrb[0].mxu0
  %v1347 = vpop.f32.mrb[0].mxu0
  %1348 = vdwg.mxu0
  %1349 = vmatprep.subr.bf16.mxu0 %v1037
  %1350 = vmatpush1.bf16.msra.mxu0 %v1036
  %1351 = vmatprep.subr.bf16.mxu0 %v1041
  %1352 = vmatpush1.bf16.msra.mxu0 %v1040
  %1353 = vmatprep.subr.bf16.mxu0 %v1045
  %1354 = vmatpush1.bf16.msra.mxu0 %v1044
  %1355 = vmatprep.subr.bf16.mxu0 %v1049
  %1356 = vmatpush1.bf16.msra.mxu0 %v1048
  %1357 = vmatprep.subr.bf16.mxu0 %v1053
  %1358 = vmatpush1.bf16.msra.mxu0 %v1052
  %1359 = vmatprep.subr.bf16.mxu0 %v1057
  %1360 = vmatpush1.bf16.msra.mxu0 %v1056
  %1361 = vmatprep.subr.bf16.mxu0 %v1061
  %1362 = vmatpush1.bf16.msra.mxu0 %v1060
  %1363 = vmatprep.subr.bf16.mxu0 %v1065
  %1364 = vmatpush1.bf16.msra.mxu0 %v1064
  %1365 = vmatprep.subr.bf16.mxu0 %v1069
  %1366 = vmatpush1.bf16.msra.mxu0 %v1068
  %1367 = vmatprep.subr.bf16.mxu0 %v1073
  %1368 = vmatpush1.bf16.msra.mxu0 %v1072
  %1369 = vmatprep.subr.bf16.mxu0 %v1077
  %1370 = vmatpush1.bf16.msra.mxu0 %v1076
  %1371 = vmatprep.subr.bf16.mxu0 %v1081
  %1372 = vmatpush1.bf16.msra.mxu0 %v1080
  %1373 = vmatprep.subr.bf16.mxu0 %v1085
  %1374 = vmatpush1.bf16.msra.mxu0 %v1084
  %1375 = vmatprep.subr.bf16.mxu0 %v1089
  %1376 = vmatpush1.bf16.msra.mxu0 %v1088
  %1377 = vmatprep.subr.bf16.mxu0 %v1093
  %1378 = vmatpush1.bf16.msra.mxu0 %v1092
  %1379 = vmatprep.subr.bf16.mxu0 %v1097
  %1380 = vmatpush1.bf16.msra.mxu0 %v1096
  %1381 = vmatprep.mubr.bf16.mxu0 %v435
  %1382 = vmatmul.mubr.bf16.gmra.mrb[0].mxu0 %v434
  %v1383 = vpop.f32.mrb[0].mxu0
  %v1384 = vadd.f32 %v1343, %v1383
  %v1385 = vpop.f32.mrb[0].mxu0
  %v1386 = vadd.f32 %v1345, %v1385
  %v1387 = vpop.f32.mrb[0].mxu0
  %v1388 = vpop.f32.mrb[0].mxu0
  %1389 = vdwg.mxu0
  %v1390 = vmax.f32 %v1302, %v1384
  %v1391 = vmax.f32 %v1304, %v1386
  %v1392 = vpack.c.bf16 %v1390, %v1390
  %v1393 = vpack.c.bf16 %v1391, %v1391
  %v1394 = vld [vmem:[%s5] sm:$0xff]
  %v1395 = vld [vmem:[%s5 + $0x8] sm:$0xff]
  %v1396 = vld [vmem:[%s5 + $0x10] sm:$0xff]
  %v1397 = vld [vmem:[%s5 + $0x18] sm:$0xff]
  %v1398 = vld [vmem:[%s5 + $0x20] sm:$0xff]
  %v1399 = vld [vmem:[%s5 + $0x28] sm:$0xff]
  %v1400 = vld [vmem:[%s5 + $0x30] sm:$0xff]
  %v1401 = vld [vmem:[%s5 + $0x38] sm:$0xff]
  %v1402 = vld [vmem:[%s5 + $0x40] sm:$0xff]
  %v1403 = vld [vmem:[%s5 + $0x48] sm:$0xff]
  %v1404 = vld [vmem:[%s5 + $0x50] sm:$0xff]
  %v1405 = vld [vmem:[%s5 + $0x58] sm:$0xff]
  %v1406 = vld [vmem:[%s5 + $0x60] sm:$0xff]
  %v1407 = vld [vmem:[%s5 + $0x68] sm:$0xff]
  %v1408 = vld [vmem:[%s5 + $0x70] sm:$0xff]
  %v1409 = vld [vmem:[%s5 + $0x78] sm:$0xff]
  %v1410 = vld [vmem:[%s5 + $0x80] sm:$0xff]
  %v1411 = vld [vmem:[%s5 + $0x88] sm:$0xff]
  %v1412 = vld [vmem:[%s5 + $0x90] sm:$0xff]
  %v1413 = vld [vmem:[%s5 + $0x98] sm:$0xff]
  %v1414 = vld [vmem:[%s5 + $0xa0] sm:$0xff]
  %v1415 = vld [vmem:[%s5 + $0xa8] sm:$0xff]
  %v1416 = vld [vmem:[%s5 + $0xb0] sm:$0xff]
  %v1417 = vld [vmem:[%s5 + $0xb8] sm:$0xff]
  %v1418 = vld [vmem:[%s5 + $0xc0] sm:$0xff]
  %v1419 = vld [vmem:[%s5 + $0xc8] sm:$0xff]
  %v1420 = vld [vmem:[%s5 + $0xd0] sm:$0xff]
  %v1421 = vld [vmem:[%s5 + $0xd8] sm:$0xff]
  %v1422 = vld [vmem:[%s5 + $0xe0] sm:$0xff]
  %v1423 = vld [vmem:[%s5 + $0xe8] sm:$0xff]
  %v1424 = vld [vmem:[%s5 + $0xf0] sm:$0xff]
  %v1425 = vld [vmem:[%s5 + $0xf8] sm:$0xff]
  %v1426 = vld [vmem:[%s6] sm:$0x3]
  %v1428 = vlaneseq
  %v1429 = vshrl.u32 %v1428, 7
  %v1430 = vsub.s32 0, %v1429
  %v1431 = vrot.slane %v1426, %v1430
  %v1432 = vlaneseq
  %v1433 = vshrl.u32 %v1432, 7
  %v1434 = vsub.s32 1, %v1433
  %v1435 = vrot.slane %v1426, %v1434
  %v1470 = vunpack.c.l.b16 %v1394
  %v1471 = vunpack.c.h.b16 %v1394
  %v1472 = vunpack.c.l.b16 %v1395
  %v1473 = vunpack.c.h.b16 %v1395
  %v1474 = vunpack.c.l.b16 %v1396
  %v1475 = vunpack.c.h.b16 %v1396
  %v1476 = vunpack.c.l.b16 %v1397
  %v1477 = vunpack.c.h.b16 %v1397
  %v1478 = vunpack.c.l.b16 %v1398
  %v1479 = vunpack.c.h.b16 %v1398
  %v1480 = vunpack.c.l.b16 %v1399
  %v1481 = vunpack.c.h.b16 %v1399
  %v1482 = vunpack.c.l.b16 %v1400
  %v1483 = vunpack.c.h.b16 %v1400
  %v1484 = vunpack.c.l.b16 %v1401
  %v1485 = vunpack.c.h.b16 %v1401
  %v1486 = vunpack.c.l.b16 %v1402
  %v1487 = vunpack.c.h.b16 %v1402
  %v1488 = vunpack.c.l.b16 %v1403
  %v1489 = vunpack.c.h.b16 %v1403
  %v1490 = vunpack.c.l.b16 %v1404
  %v1491 = vunpack.c.h.b16 %v1404
  %v1492 = vunpack.c.l.b16 %v1405
  %v1493 = vunpack.c.h.b16 %v1405
  %v1494 = vunpack.c.l.b16 %v1406
  %v1495 = vunpack.c.h.b16 %v1406
  %v1496 = vunpack.c.l.b16 %v1407
  %v1497 = vunpack.c.h.b16 %v1407
  %v1498 = vunpack.c.l.b16 %v1408
  %v1499 = vunpack.c.h.b16 %v1408
  %v1500 = vunpack.c.l.b16 %v1409
  %v1501 = vunpack.c.h.b16 %v1409
  %v1502 = vunpack.c.l.b16 %v1410
  %v1503 = vunpack.c.h.b16 %v1410
  %v1504 = vunpack.c.l.b16 %v1411
  %v1505 = vunpack.c.h.b16 %v1411
  %v1506 = vunpack.c.l.b16 %v1412
  %v1507 = vunpack.c.h.b16 %v1412
  %v1508 = vunpack.c.l.b16 %v1413
  %v1509 = vunpack.c.h.b16 %v1413
  %v1510 = vunpack.c.l.b16 %v1414
  %v1511 = vunpack.c.h.b16 %v1414
  %v1512 = vunpack.c.l.b16 %v1415
  %v1513 = vunpack.c.h.b16 %v1415
  %v1514 = vunpack.c.l.b16 %v1416
  %v1515 = vunpack.c.h.b16 %v1416
  %v1516 = vunpack.c.l.b16 %v1417
  %v1517 = vunpack.c.h.b16 %v1417
  %v1518 = vunpack.c.l.b16 %v1418
  %v1519 = vunpack.c.h.b16 %v1418
  %v1520 = vunpack.c.l.b16 %v1419
  %v1521 = vunpack.c.h.b16 %v1419
  %v1522 = vunpack.c.l.b16 %v1420
  %v1523 = vunpack.c.h.b16 %v1420
  %v1524 = vunpack.c.l.b16 %v1421
  %v1525 = vunpack.c.h.b16 %v1421
  %v1526 = vunpack.c.l.b16 %v1422
  %v1527 = vunpack.c.h.b16 %v1422
  %v1528 = vunpack.c.l.b16 %v1423
  %v1529 = vunpack.c.h.b16 %v1423
  %v1530 = vunpack.c.l.b16 %v1424
  %v1531 = vunpack.c.h.b16 %v1424
  %v1532 = vunpack.c.l.b16 %v1425
  %v1533 = vunpack.c.h.b16 %v1425
  %v1534 = vpack.c.b16 %v1472, %v1470
  %v1535 = vpack.c.b16 %v1473, %v1471
  %v1536 = vpack.c.b16 %v1476, %v1474
  %v1537 = vpack.c.b16 %v1477, %v1475
  %v1538 = vpack.c.b16 %v1480, %v1478
  %v1539 = vpack.c.b16 %v1481, %v1479
  %v1540 = vpack.c.b16 %v1484, %v1482
  %v1541 = vpack.c.b16 %v1485, %v1483
  %v1542 = vpack.c.b16 %v1488, %v1486
  %v1543 = vpack.c.b16 %v1489, %v1487
  %v1544 = vpack.c.b16 %v1492, %v1490
  %v1545 = vpack.c.b16 %v1493, %v1491
  %v1546 = vpack.c.b16 %v1496, %v1494
  %v1547 = vpack.c.b16 %v1497, %v1495
  %v1548 = vpack.c.b16 %v1500, %v1498
  %v1549 = vpack.c.b16 %v1501, %v1499
  %v1550 = vpack.c.b16 %v1504, %v1502
  %v1551 = vpack.c.b16 %v1505, %v1503
  %v1552 = vpack.c.b16 %v1508, %v1506
  %v1553 = vpack.c.b16 %v1509, %v1507
  %v1554 = vpack.c.b16 %v1512, %v1510
  %v1555 = vpack.c.b16 %v1513, %v1511
  %v1556 = vpack.c.b16 %v1516, %v1514
  %v1557 = vpack.c.b16 %v1517, %v1515
  %v1558 = vpack.c.b16 %v1520, %v1518
  %v1559 = vpack.c.b16 %v1521, %v1519
  %v1560 = vpack.c.b16 %v1524, %v1522
  %v1561 = vpack.c.b16 %v1525, %v1523
  %v1562 = vpack.c.b16 %v1528, %v1526
  %v1563 = vpack.c.b16 %v1529, %v1527
  %v1564 = vpack.c.b16 %v1532, %v1530
  %v1565 = vpack.c.b16 %v1533, %v1531
  %1598 = vmatprep.subr.bf16.mxu0 %v1535
  %1599 = vmatpush1.bf16.msra.mxu0 %v1534
  %1600 = vmatprep.subr.bf16.mxu0 %v1537
  %1601 = vmatpush1.bf16.msra.mxu0 %v1536
  %1602 = vmatprep.subr.bf16.mxu0 %v1539
  %1603 = vmatpush1.bf16.msra.mxu0 %v1538
  %1604 = vmatprep.subr.bf16.mxu0 %v1541
  %1605 = vmatpush1.bf16.msra.mxu0 %v1540
  %1606 = vmatprep.subr.bf16.mxu0 %v1543
  %1607 = vmatpush1.bf16.msra.mxu0 %v1542
  %1608 = vmatprep.subr.bf16.mxu0 %v1545
  %1609 = vmatpush1.bf16.msra.mxu0 %v1544
  %1610 = vmatprep.subr.bf16.mxu0 %v1547
  %1611 = vmatpush1.bf16.msra.mxu0 %v1546
  %1612 = vmatprep.subr.bf16.mxu0 %v1549
  %1613 = vmatpush1.bf16.msra.mxu0 %v1548
  %1614 = vmatprep.subr.bf16.mxu0 %v1551
  %1615 = vmatpush1.bf16.msra.mxu0 %v1550
  %1616 = vmatprep.subr.bf16.mxu0 %v1553
  %1617 = vmatpush1.bf16.msra.mxu0 %v1552
  %1618 = vmatprep.subr.bf16.mxu0 %v1555
  %1619 = vmatpush1.bf16.msra.mxu0 %v1554
  %1620 = vmatprep.subr.bf16.mxu0 %v1557
  %1621 = vmatpush1.bf16.msra.mxu0 %v1556
  %1622 = vmatprep.subr.bf16.mxu0 %v1559
  %1623 = vmatpush1.bf16.msra.mxu0 %v1558
  %1624 = vmatprep.subr.bf16.mxu0 %v1561
  %1625 = vmatpush1.bf16.msra.mxu0 %v1560
  %1626 = vmatprep.subr.bf16.mxu0 %v1563
  %1627 = vmatpush1.bf16.msra.mxu0 %v1562
  %1628 = vmatprep.subr.bf16.mxu0 %v1565
  %1629 = vmatpush1.bf16.msra.mxu0 %v1564
  %1630 = vmatprep.mubr.bf16.mxu0 %v1393
  %1631 = vmatmul.mubr.bf16.gmra.mrb[0].mxu0 %v1392
  %v1632 = vpop.f32.mrb[0].mxu0
  %v1633 = vadd.f32 %v1431, %v1632
  %v1634 = vpop.f32.mrb[0].mxu0
  %v1635 = vadd.f32 %v1435, %v1634
  %v1636 = vpop.f32.mrb[0].mxu0
  %v1637 = vpop.f32.mrb[0].mxu0
  %1638 = vdwg.mxu0
  %v1639 = vmax.f32 %v1633, 0.0
  %v1640 = vmax.f32 %v1635, 0.0
  %v1641 = vpack.c.bf16 %v1639, %v1639
  %v1642 = vpack.c.bf16 %v1640, %v1640
  %v1643 = vld [vmem:[%s7] sm:$0xf]
  %v1644 = vld [vmem:[%s7 + $0x4] sm:$0xf]
  %v1645 = vld [vmem:[%s7 + $0x8] sm:$0xf]
  %v1646 = vld [vmem:[%s7 + $0xc] sm:$0xf]
  %v1647 = vld [vmem:[%s7 + $0x10] sm:$0xf]
  %v1648 = vld [vmem:[%s7 + $0x14] sm:$0xf]
  %v1649 = vld [vmem:[%s7 + $0x18] sm:$0xf]
  %v1650 = vld [vmem:[%s7 + $0x1c] sm:$0xf]
  %v1651 = vld [vmem:[%s7 + $0x20] sm:$0xf]
  %v1652 = vld [vmem:[%s7 + $0x24] sm:$0xf]
  %v1653 = vld [vmem:[%s7 + $0x28] sm:$0xf]
  %v1654 = vld [vmem:[%s7 + $0x2c] sm:$0xf]
  %v1655 = vld [vmem:[%s7 + $0x30] sm:$0xf]
  %v1656 = vld [vmem:[%s7 + $0x34] sm:$0xf]
  %v1657 = vld [vmem:[%s7 + $0x38] sm:$0xf]
  %v1658 = vld [vmem:[%s7 + $0x3c] sm:$0xf]
  %v1659 = vld [vmem:[%s7 + $0x40] sm:$0xf]
  %v1660 = vld [vmem:[%s7 + $0x44] sm:$0xf]
  %v1661 = vld [vmem:[%s7 + $0x48] sm:$0xf]
  %v1662 = vld [vmem:[%s7 + $0x4c] sm:$0xf]
  %v1663 = vld [vmem:[%s7 + $0x50] sm:$0xf]
  %v1664 = vld [vmem:[%s7 + $0x54] sm:$0xf]
  %v1665 = vld [vmem:[%s7 + $0x58] sm:$0xf]
  %v1666 = vld [vmem:[%s7 + $0x5c] sm:$0xf]
  %v1667 = vld [vmem:[%s7 + $0x60] sm:$0xf]
  %v1668 = vld [vmem:[%s7 + $0x64] sm:$0xf]
  %v1669 = vld [vmem:[%s7 + $0x68] sm:$0xf]
  %v1670 = vld [vmem:[%s7 + $0x6c] sm:$0xf]
  %v1671 = vld [vmem:[%s7 + $0x70] sm:$0xf]
  %v1672 = vld [vmem:[%s7 + $0x74] sm:$0xf]
  %v1673 = vld [vmem:[%s7 + $0x78] sm:$0xf]
  %v1674 = vld [vmem:[%s7 + $0x7c] sm:$0xf]
  %v1675 = vld [vmem:[%s8] sm:$0x1]
  %v1677 = vlaneseq
  %v1678 = vshrl.u32 %v1677, 7
  %v1679 = vsub.s32 0, %v1678
  %v1680 = vrot.slane %v1675, %v1679
  %v1714 = vunpack.c.l.b16 %v1643
  %v1715 = vunpack.c.l.b16 %v1644
  %v1716 = vunpack.c.l.b16 %v1645
  %v1717 = vunpack.c.l.b16 %v1646
  %v1718 = vunpack.c.l.b16 %v1647
  %v1719 = vunpack.c.l.b16 %v1648
  %v1720 = vunpack.c.l.b16 %v1649
  %v1721 = vunpack.c.l.b16 %v1650
  %v1722 = vunpack.c.l.b16 %v1651
  %v1723 = vunpack.c.l.b16 %v1652
  %v1724 = vunpack.c.l.b16 %v1653
  %v1725 = vunpack.c.l.b16 %v1654
  %v1726 = vunpack.c.l.b16 %v1655
  %v1727 = vunpack.c.l.b16 %v1656
  %v1728 = vunpack.c.l.b16 %v1657
  %v1729 = vunpack.c.l.b16 %v1658
  %v1730 = vunpack.c.l.b16 %v1659
  %v1731 = vunpack.c.l.b16 %v1660
  %v1732 = vunpack.c.l.b16 %v1661
  %v1733 = vunpack.c.l.b16 %v1662
  %v1734 = vunpack.c.l.b16 %v1663
  %v1735 = vunpack.c.l.b16 %v1664
  %v1736 = vunpack.c.l.b16 %v1665
  %v1737 = vunpack.c.l.b16 %v1666
  %v1738 = vunpack.c.l.b16 %v1667
  %v1739 = vunpack.c.l.b16 %v1668
  %v1740 = vunpack.c.l.b16 %v1669
  %v1741 = vunpack.c.l.b16 %v1670
  %v1742 = vunpack.c.l.b16 %v1671
  %v1743 = vunpack.c.l.b16 %v1672
  %v1744 = vunpack.c.l.b16 %v1673
  %v1745 = vunpack.c.l.b16 %v1674
  %v1746 = vpack.c.b16 %v1715, %v1714
  %v1747 = vpack.c.b16 %v1717, %v1716
  %v1748 = vpack.c.b16 %v1719, %v1718
  %v1749 = vpack.c.b16 %v1721, %v1720
  %v1750 = vpack.c.b16 %v1723, %v1722
  %v1751 = vpack.c.b16 %v1725, %v1724
  %v1752 = vpack.c.b16 %v1727, %v1726
  %v1753 = vpack.c.b16 %v1729, %v1728
  %v1754 = vpack.c.b16 %v1731, %v1730
  %v1755 = vpack.c.b16 %v1733, %v1732
  %v1756 = vpack.c.b16 %v1735, %v1734
  %v1757 = vpack.c.b16 %v1737, %v1736
  %v1758 = vpack.c.b16 %v1739, %v1738
  %v1759 = vpack.c.b16 %v1741, %v1740
  %v1760 = vpack.c.b16 %v1743, %v1742
  %v1761 = vpack.c.b16 %v1745, %v1744
  %1778 = vmatprep.subr.bf16.mxu0 0
  %1779 = vmatpush1.bf16.msra.mxu0 %v1746
  %1780 = vmatprep.subr.bf16.mxu0 0
  %1781 = vmatpush1.bf16.msra.mxu0 %v1747
  %1782 = vmatprep.subr.bf16.mxu0 0
  %1783 = vmatpush1.bf16.msra.mxu0 %v1748
  %1784 = vmatprep.subr.bf16.mxu0 0
  %1785 = vmatpush1.bf16.msra.mxu0 %v1749
  %1786 = vmatprep.subr.bf16.mxu0 0
  %1787 = vmatpush1.bf16.msra.mxu0 %v1750
  %1788 = vmatprep.subr.bf16.mxu0 0
  %1789 = vmatpush1.bf16.msra.mxu0 %v1751
  %1790 = vmatprep.subr.bf16.mxu0 0
  %1791 = vmatpush1.bf16.msra.mxu0 %v1752
  %1792 = vmatprep.subr.bf16.mxu0 0
  %1793 = vmatpush1.bf16.msra.mxu0 %v1753
  %1794 = vmatprep.subr.bf16.mxu0 0
  %1795 = vmatpush1.bf16.msra.mxu0 %v1754
  %1796 = vmatprep.subr.bf16.mxu0 0
  %1797 = vmatpush1.bf16.msra.mxu0 %v1755
  %1798 = vmatprep.subr.bf16.mxu0 0
  %1799 = vmatpush1.bf16.msra.mxu0 %v1756
  %1800 = vmatprep.subr.bf16.mxu0 0
  %1801 = vmatpush1.bf16.msra.mxu0 %v1757
  %1802 = vmatprep.subr.bf16.mxu0 0
  %1803 = vmatpush1.bf16.msra.mxu0 %v1758
  %1804 = vmatprep.subr.bf16.mxu0 0
  %1805 = vmatpush1.bf16.msra.mxu0 %v1759
  %1806 = vmatprep.subr.bf16.mxu0 0
  %1807 = vmatpush1.bf16.msra.mxu0 %v1760
  %1808 = vmatprep.subr.bf16.mxu0 0
  %1809 = vmatpush1.bf16.msra.mxu0 %v1761
  %1810 = vmatprep.mubr.bf16.mxu0 %v1642
  %1811 = vmatmul.mubr.bf16.gmra.mrb[0].mxu0 %v1641
  %v1812 = vpop.f32.mrb[0].mxu0
  %v1813 = vadd.f32 %v1680, %v1812
  %v1814 = vpop.f32.mrb[0].mxu0
  %v1815 = vpop.f32.mrb[0].mxu0
  %v1816 = vpop.f32.mrb[0].mxu0
  %1817 = vdwg.mxu0
  %1818 = vst [vmem:[%s9] sm:$0xff] %v1813
  // Predicated region
  $region38: #{_lambda_.1} parent=0 // pred_check
    _
  $region39: #{_lambda_.1} parent=0 // pred_check_branch
    %1820 = sbr.rel (0) target = $region41
  $region40: #{_lambda_.1} parent=0 // pred_region
    _
  $region41: #{_lambda_.1} parent=0 // pred_fallthru
    _
  // Predicated region
  $region42: #{_lambda_.1} parent=0 // pred_check
    _
  $region43: #{_lambda_.1} parent=0 // pred_check_branch
    %1822 = sbr.rel (0) target = $region45
  $region44: #{_lambda_.1} parent=0 // pred_region
    _
  $region45: #{_lambda_.1} parent=0 // pred_fallthru
    _

</llo_original>
